<compile_context>
chip_gen: v7x
topology: tpu7x:2x2x1
jax: 0.10.0
libtpu: 0.0.40
codegen_flags: <defaults>
</compile_context>

<pallas_src>
import functools

import jax
import jax.numpy as jnp
from jax import lax
from jax.experimental import pallas as pl
from jax.experimental.pallas import tpu as pltpu

BN_EPS = 1e-5       # torch.nn.BatchNorm1d default eps
NORM_EPS = 1e-12    # torch.nn.functional.normalize default eps


# --------------------------------------------------------------------------------------
# helpers
# --------------------------------------------------------------------------------------
def _spec(shape, index_map, single_buffer=False):
    """BlockSpec helper; single_buffer=True marks a grid-constant operand (no 2nd buffer)."""
    if single_buffer:
        try:
            return pl.BlockSpec(shape, index_map, pipeline_mode=pl.Buffered(1))
        except TypeError:  # older jax without pipeline_mode kwarg: default buffering
            pass
    return pl.BlockSpec(shape, index_map)


def _vmem_limit_bytes():
    # Chip-aware VMEM limit: ~3/4 of physical VMEM (v5e/v6e: ~96 MiB, v7x: ~48 MiB).
    try:
        cap = int(pltpu.get_tpu_info().vmem_capacity_bytes)
    except Exception:
        cap = 64 * 1024 * 1024
    return max(32 * 1024 * 1024, min((cap * 3) // 4, 112 * 1024 * 1024))


def _pick_tiles(b, in_dim, repre_dim, budget):
    # Row tile within a view (second-minor dim: multiple of 8, else the full dim).
    tm = b
    for cand in (256, 128, 64, 32, 16, 8):
        if b % cand == 0:
            tm = cand
            break
    # K tile: largest 128-multiple divisor of in_dim whose working set fits the budget.
    for tk in (4096, 2048, 1024, 512, 256, 128):
        if in_dim % tk == 0:
            est = (2 * 2 * tm * tk * 4            # x1/x2 tiles, f32, double-buffered
                   + 2 * tk * repre_dim * 2       # wb tile, bf16, double-buffered
                   + 2 * tm * repre_dim * 4       # f32 accumulators
                   + 2 * 2 * tm * repre_dim * 2   # h1/h2 output blocks, double-buffered
                   + repre_dim * 4)               # bb (single-buffered)
            if est <= budget:
                return tm, tk
    return tm, (128 if in_dim % 128 == 0 else in_dim)


# --------------------------------------------------------------------------------------
# call 1: backbone encoder (flatten + Linear), streamed over the contraction axis
# --------------------------------------------------------------------------------------
def backbone_kernel(x1_ref, x2_ref, wb_ref, bb_ref, h1_ref, h2_ref, acc1_ref, acc2_ref):
    k = pl.program_id(1)

    @pl.when(k == 0)
    def _():
        acc1_ref[...] = jnp.zeros_like(acc1_ref)
        acc2_ref[...] = jnp.zeros_like(acc2_ref)

    # In-kernel f32 -> bf16 cast (VPU, hidden under the HBM stream); f32 MXU accumulate.
    w = wb_ref[...]
    acc1_ref[...] += jnp.dot(x1_ref[...].astype(jnp.bfloat16), w,
                             preferred_element_type=jnp.float32)
    acc2_ref[...] += jnp.dot(x2_ref[...].astype(jnp.bfloat16), w,
                             preferred_element_type=jnp.float32)

    @pl.when(k == pl.num_programs(1) - 1)
    def _():
        bb = bb_ref[...]
        h1_ref[...] = (acc1_ref[...] + bb).astype(h1_ref.dtype)
        h2_ref[...] = (acc2_ref[...] + bb).astype(h2_ref.dtype)


def _backbone_call(x1f, x2f, wb, bb, vmem_limit, single_buffer):
    B, in_dim = x1f.shape
    repre_dim = wb.shape[1]
    tm, tk = _pick_tiles(B, in_dim, repre_dim, budget=(vmem_limit * 7) // 10)
    mt, nk = B // tm, in_dim // tk

    in_specs = [
        pl.BlockSpec((tm, tk), lambda i, k: (i, k)),            # x1: streamed tiles
        pl.BlockSpec((tm, tk), lambda i, k: (i, k)),            # x2: streamed tiles
        pl.BlockSpec((tk, repre_dim), lambda i, k: (k, 0)),     # wb: streamed K tiles
        _spec((1, repre_dim), lambda i, k: (0, 0), single_buffer),   # bb: grid-constant
    ]
    out_specs = [
        pl.BlockSpec((tm, repre_dim), lambda i, k: (i, 0)),
        pl.BlockSpec((tm, repre_dim), lambda i, k: (i, 0)),
    ]
    out_shape = (jax.ShapeDtypeStruct((B, repre_dim), jnp.bfloat16),
                 jax.ShapeDtypeStruct((B, repre_dim), jnp.bfloat16))

    flops = int(2 * 2 * B * in_dim * repre_dim)
    bytes_accessed = int(x1f.size * 4 + x2f.size * 4 + wb.size * 2 * mt
                         + bb.size * 4 + 2 * B * repre_dim * 2)

    grid_spec = pltpu.PrefetchScalarGridSpec(
        num_scalar_prefetch=0,
        grid=(mt, nk),
        in_specs=in_specs,
        out_specs=out_specs,
        scratch_shapes=[pltpu.VMEM((tm, repre_dim), jnp.float32),
                        pltpu.VMEM((tm, repre_dim), jnp.float32)],
    )
    return pl.pallas_call(
        backbone_kernel,
        out_shape=out_shape,
        grid_spec=grid_spec,
        compiler_params=pltpu.CompilerParams(
            dimension_semantics=("parallel", "arbitrary"),   # rows parallel, K reduction
            vmem_limit_bytes=vmem_limit,
        ),
        cost_estimate=pl.CostEstimate(flops=flops, transcendentals=0,
                                      bytes_accessed=bytes_accessed),
    )(x1f, x2f, wb, bb)


# --------------------------------------------------------------------------------------
# call 2: projector MLP (per-view BatchNorm) + NT-Xent loss
# --------------------------------------------------------------------------------------
def projector_ntxent_kernel(h1_ref, h2_ref,
                            w1_ref, b1_ref, g1_ref, be1_ref,
                            w2_ref, b2_ref, g2_ref, be2_ref,
                            w3_ref, b3_ref, g3_ref, be3_ref,
                            loss_ref, *, inv_temperature):
    def bn(a, g, be):
        # BatchNorm1d, training mode, biased variance, per-view stats (a = one view only).
        mu = jnp.mean(a, axis=0, keepdims=True)
        var = jnp.mean(jnp.square(a - mu), axis=0, keepdims=True)
        scale = g * lax.rsqrt(var + jnp.float32(BN_EPS))
        shift = be - mu * scale
        return a * scale + shift

    def project(h):
        # Linear -> BN -> ReLU, Linear -> BN -> ReLU, Linear -> BN (batchnorm_last=True)
        a = jnp.dot(h, w1_ref[...], preferred_element_type=jnp.float32) + b1_ref[...]
        a = jnp.maximum(bn(a, g1_ref[...], be1_ref[...]), 0.0)
        a = jnp.dot(a.astype(jnp.bfloat16), w2_ref[...],
                    preferred_element_type=jnp.float32) + b2_ref[...]
        a = jnp.maximum(bn(a, g2_ref[...], be2_ref[...]), 0.0)
        a = jnp.dot(a.astype(jnp.bfloat16), w3_ref[...],
                    preferred_element_type=jnp.float32) + b3_ref[...]
        z = bn(a, g3_ref[...], be3_ref[...])
        # F.normalize(z, dim=-1): z / max(||z||, eps) == z * rsqrt(max(||z||^2, eps^2))
        sq = jnp.sum(z * z, axis=-1, keepdims=True)
        return z * lax.rsqrt(jnp.maximum(sq, jnp.float32(NORM_EPS * NORM_EPS)))

    z1 = project(h1_ref[...])
    z2 = project(h2_ref[...])
    b = z1.shape[0]

    z1b = z1.astype(jnp.bfloat16)
    z2b = z2.astype(jnp.bfloat16)

    def sim(lhs, rhs):
        # lhs @ rhs.T on the MXU: contract dim 1 of both (no transpose materialized).
        return lax.dot_general(lhs, rhs, dimension_numbers=(((1,), (1,)), ((), ())),
                               preferred_element_type=jnp.float32) * inv_temperature

    s11 = sim(z1b, z1b)
    s12 = sim(z1b, z2b)
    s21 = sim(z2b, z1b)
    s22 = sim(z2b, z2b)

    # Self-similarity mask from a [B,1] x [1,B] iota broadcast (no [2B,2B] iotas/selects).
    r = lax.broadcasted_iota(jnp.int32, (b, 1), 0)
    c = lax.broadcasted_iota(jnp.int32, (1, b), 1)
    diag = r == c
    neg = jnp.float32(-1e9)
    s11m = jnp.where(diag, neg, s11)
    s22m = jnp.where(diag, neg, s22)

    # 2-block online logsumexp per row (never builds a [2B, 2B] logits matrix).
    # TODO(synk): for very large B, stream the similarity column blocks flash-style.
    def lse2(blk_a, blk_b):
        m = jnp.maximum(jnp.max(blk_a, axis=-1, keepdims=True),
                        jnp.max(blk_b, axis=-1, keepdims=True))
        s = (jnp.sum(jnp.exp(blk_a - m), axis=-1, keepdims=True)
             + jnp.sum(jnp.exp(blk_b - m), axis=-1, keepdims=True))
        return jnp.log(s) + m

    lse_top = lse2(s11m, s12)    # rows 0..B-1   (view-1 anchors)
    lse_bot = lse2(s21, s22m)    # rows B..2B-1  (view-2 anchors)

    # Positive logit = diag(s12) (= diag(s21)); same bf16 matmul as the denominator.
    pos = jnp.sum(jnp.where(diag, s12, 0.0), axis=-1, keepdims=True)

    # cross-entropy over 2B anchors: mean(lse) - mean(pos)
    loss_ref[0, 0] = 0.5 * (jnp.mean(lse_top) + jnp.mean(lse_bot)) - jnp.mean(pos)


def _tail_call(h1, h2, proj, temperature, vmem_limit, single_buffer):
    w1, b1, g1, be1, w2, b2, g2, be2, w3, b3, g3, be3 = proj
    B, repre_dim = h1.shape
    d1, d2, out_dim = w1.shape[1], w2.shape[1], w3.shape[1]

    def const(shape):
        return _spec(shape, lambda i: (0, 0), single_buffer)

    in_specs = [
        const((B, repre_dim)), const((B, repre_dim)),
        const((repre_dim, d1)), const((1, d1)), const((1, d1)), const((1, d1)),
        const((d1, d2)), const((1, d2)), const((1, d2)), const((1, d2)),
        const((d2, out_dim)), const((1, out_dim)), const((1, out_dim)), const((1, out_dim)),
    ]
    args = (h1, h2, w1, b1, g1, be1, w2, b2, g2, be2, w3, b3, g3, be3)

    n = 2 * B
    flops = int(2 * n * (repre_dim * d1 + d1 * d2 + d2 * out_dim) + 8 * B * B * out_dim)
    transcendentals = int(4 * B * B + 8 * n)   # exp / log / rsqrt (rough)
    bytes_accessed = int(sum(int(a.size) * a.dtype.itemsize for a in args) + 4)

    grid_spec = pltpu.PrefetchScalarGridSpec(
        num_scalar_prefetch=0,
        grid=(1,),
        in_specs=in_specs,
        out_specs=pl.BlockSpec((1, 1), lambda i: (0, 0)),
    )
    kernel = functools.partial(projector_ntxent_kernel,
                               inv_temperature=float(1.0 / temperature))
    return pl.pallas_call(
        kernel,
        out_shape=jax.ShapeDtypeStruct((1, 1), jnp.float32),
        grid_spec=grid_spec,
        compiler_params=pltpu.CompilerParams(
            dimension_semantics=("arbitrary",),
            vmem_limit_bytes=vmem_limit,
        ),
        cost_estimate=pl.CostEstimate(flops=flops, transcendentals=transcendentals,
                                      bytes_accessed=bytes_accessed),
    )(*args)


# --------------------------------------------------------------------------------------
# wrapper (glue only: flatten views, optional K padding, weight dtype cast)
# --------------------------------------------------------------------------------------
def _simclr_forward_impl(x1, x2, params, temperature, single_buffer):
    B = x1.shape[0]
    # Flatten NCHW to [B, in_dim]: a view, no copy, NO concat/cast pass over the inputs.
    x1f = x1.reshape(B, -1).astype(jnp.float32)
    x2f = x2.reshape(B, -1).astype(jnp.float32)
    in_dim = x1f.shape[1]

    wb = params["wb"]
    pad = (-in_dim) % 128
    if pad:  # pad K to a lane multiple with zeros (mathematically identity)
        x1f = jnp.pad(x1f, ((0, 0), (0, pad)))
        x2f = jnp.pad(x2f, ((0, 0), (0, pad)))
        wb = jnp.pad(wb, ((0, pad), (0, 0)))

    # Weights to bf16 (amortized across steps in training); activations stay f32 in HBM
    # and are cast to bf16 inside the kernels, right next to the MXU.
    wb = wb.astype(jnp.bfloat16)
    w1 = params["w1"].astype(jnp.bfloat16)
    w2 = params["w2"].astype(jnp.bfloat16)
    w3 = params["w3"].astype(jnp.bfloat16)

    vmem_limit = _vmem_limit_bytes()

    h1, h2 = _backbone_call(x1f, x2f, wb, params["bb"], vmem_limit, single_buffer)
    loss = _tail_call(h1, h2,
                      (w1, params["b1"], params["g1"], params["be1"],
                       w2, params["b2"], params["g2"], params["be2"],
                       w3, params["b3"], params["g3"], params["be3"]),
                      temperature, vmem_limit, single_buffer)
    return loss[0, 0]


def simclr_forward(x1, x2, params, temperature=0.2):
    try:
        return _simclr_forward_impl(x1, x2, params, temperature, single_buffer=True)
    except Exception:
        # Fallback for jax versions where pipeline_mode=pl.Buffered(1) is unsupported.
        return _simclr_forward_impl(x1, x2, params, temperature, single_buffer=False)


def init_params(key, in_dim, repre_dim, hidden):
    h1, h2, out = hidden
    keys = jax.random.split(key, 4)

    def lin_w(k, din, dout):
        return (jax.random.normal(k, (din, dout), jnp.float32) / jnp.sqrt(din)).astype(jnp.float32)

    def bn(d):
        return jnp.ones((1, d), jnp.float32), jnp.zeros((1, d), jnp.float32)

    g1, be1 = bn(h1)
    g2, be2 = bn(h2)
    g3, be3 = bn(out)
    return dict(
        wb=lin_w(keys[0], in_dim, repre_dim), bb=jnp.zeros((1, repre_dim), jnp.float32),
        w1=lin_w(keys[1], repre_dim, h1), b1=jnp.zeros((1, h1), jnp.float32), g1=g1, be1=be1,
        w2=lin_w(keys[2], h1, h2), b2=jnp.zeros((1, h2), jnp.float32), g2=g2, be2=be2,
        w3=lin_w(keys[3], h2, out), b3=jnp.zeros((1, out), jnp.float32), g3=g3, be3=be3,
    )


if __name__ == "__main__":
    key = jax.random.PRNGKey(0)
    kx1, kx2, kp = jax.random.split(key, 3)

    # NOTE: toy shapes; in production use 2B >= 256 and 256-multiple widths so the
    # 256x256 MXU tiles (v6e/v7x) are actually filled.
    B, C, H, W = 8, 4, 16, 16           # two small NCHW augmented views
    repre_dim = 128                     # backbone representation dim
    projector_hidden = (256, 256, 128)  # scaled-down version of (2048, 2048, 256)
    temperature = 0.2

    x1 = jax.random.normal(kx1, (B, C, H, W), jnp.float32)
    x2 = jax.random.normal(kx2, (B, C, H, W), jnp.float32)
    params = init_params(kp, C * H * W, repre_dim, projector_hidden)

    loss = simclr_forward(x1, x2, params, temperature=temperature)
    jax.block_until_ready(loss)
    assert loss.shape == () and bool(jnp.isfinite(loss))
    print("KERNEL_OK")
</pallas_src>

<mosaic_0001>
module attributes {stable_mosaic.version = 11 : i64} {
  func.func @backbone_kernel(%arg0: i32, %arg1: i32, %arg2: memref<8x1024xf32, #tpu.memory_space<vmem>>, %arg3: memref<8x1024xf32, #tpu.memory_space<vmem>>, %arg4: memref<1024x128xbf16, #tpu.memory_space<vmem>>, %arg5: memref<1x128xf32, #tpu.memory_space<vmem>>, %arg6: memref<8x128xbf16, #tpu.memory_space<vmem>>, %arg7: memref<8x128xbf16, #tpu.memory_space<vmem>>, %arg8: memref<8x128xf32, #tpu.memory_space<vmem>>, %arg9: memref<8x128xf32, #tpu.memory_space<vmem>>) attributes {dimension_semantics = [#tpu.dimension_semantics<parallel>, #tpu.dimension_semantics<arbitrary>], iteration_bounds = array<i64: 1, 1>, scalar_prefetch = 0 : i64, scratch_operands = 2 : i64, tpu.core_type = #tpu.core_type<tc>, window_params = [{transform_indices = @transform_0, window_bounds = array<i64: 8, 1024>}, {transform_indices = @transform_1, window_bounds = array<i64: 8, 1024>}, {transform_indices = @transform_2, window_bounds = array<i64: 1024, 128>}, {pipeline_mode = #tpu.pipeline_mode<synchronous>, transform_indices = @transform_3, window_bounds = array<i64: 1, 128>}, {transform_indices = @transform_4, window_bounds = array<i64: 8, 128>}, {transform_indices = @transform_5, window_bounds = array<i64: 8, 128>}]} {
    %c0_i32 = arith.constant 0 : i32
    %0 = arith.cmpi eq, %arg1, %c0_i32 : i32
    %1 = arith.extui %0 : i1 to i32
    %c0_i32_0 = arith.constant 0 : i32
    %2 = arith.cmpi ne, %1, %c0_i32_0 : i32
    scf.if %2 {
      %cst_17 = arith.constant 0.000000e+00 : f32
      %19 = vector.broadcast %cst_17 : f32 to vector<8x128xf32>
      %c0_18 = arith.constant 0 : index
      %c0_19 = arith.constant 0 : index
      %20 = vector.load %arg8[%c0_18, %c0_19] : memref<8x128xf32, #tpu.memory_space<vmem>>, vector<8x128xf32>
      tpu.vector_store %arg8[%c0_18, %c0_19], %19 {strides = array<i32>} : memref<8x128xf32, #tpu.memory_space<vmem>>, vector<8x128xf32>,
      %cst_20 = arith.constant 0.000000e+00 : f32
      %21 = vector.broadcast %cst_20 : f32 to vector<8x128xf32>
      %c0_21 = arith.constant 0 : index
      %c0_22 = arith.constant 0 : index
      %22 = vector.load %arg9[%c0_21, %c0_22] : memref<8x128xf32, #tpu.memory_space<vmem>>, vector<8x128xf32>
      tpu.vector_store %arg9[%c0_21, %c0_22], %21 {strides = array<i32>} : memref<8x128xf32, #tpu.memory_space<vmem>>, vector<8x128xf32>,
    } else {
    }
    %c0 = arith.constant 0 : index
    %c0_1 = arith.constant 0 : index
    %3 = vector.load %arg4[%c0, %c0_1] : memref<1024x128xbf16, #tpu.memory_space<vmem>>, vector<1024x128xbf16>
    %c0_2 = arith.constant 0 : index
    %c0_3 = arith.constant 0 : index
    %4 = vector.load %arg8[%c0_2, %c0_3] : memref<8x128xf32, #tpu.memory_space<vmem>>, vector<8x128xf32>
    %c0_4 = arith.constant 0 : index
    %c0_5 = arith.constant 0 : index
    %5 = vector.load %arg2[%c0_4, %c0_5] : memref<8x1024xf32, #tpu.memory_space<vmem>>, vector<8x1024xf32>
    %6 = arith.truncf %5 : vector<8x1024xf32> to vector<8x1024xbf16>
    %cst = arith.constant dense<0.000000e+00> : vector<8x128xf32>
    %7 = tpu.matmul %6, %3, %cst {dimension_numbers = #tpu.dot_dimension_numbers<[1], [0], [0], [1], [0, 0, 1, 1], [], []>} : vector<8x1024xbf16>, vector<1024x128xbf16>, vector<8x128xf32> -> vector<8x128xf32>
    %8 = arith.addf %4, %7 : vector<8x128xf32>
    %c0_6 = arith.constant 0 : index
    %c0_7 = arith.constant 0 : index
    %9 = vector.load %arg8[%c0_6, %c0_7] : memref<8x128xf32, #tpu.memory_space<vmem>>, vector<8x128xf32>
    tpu.vector_store %arg8[%c0_6, %c0_7], %8 {strides = array<i32>} : memref<8x128xf32, #tpu.memory_space<vmem>>, vector<8x128xf32>,
    %c0_8 = arith.constant 0 : index
    %c0_9 = arith.constant 0 : index
    %10 = vector.load %arg9[%c0_8, %c0_9] : memref<8x128xf32, #tpu.memory_space<vmem>>, vector<8x128xf32>
    %c0_10 = arith.constant 0 : index
    %c0_11 = arith.constant 0 : index
    %11 = vector.load %arg3[%c0_10, %c0_11] : memref<8x1024xf32, #tpu.memory_space<vmem>>, vector<8x1024xf32>
    %12 = arith.truncf %11 : vector<8x1024xf32> to vector<8x1024xbf16>
    %cst_12 = arith.constant dense<0.000000e+00> : vector<8x128xf32>
    %13 = tpu.matmul %12, %3, %cst_12 {dimension_numbers = #tpu.dot_dimension_numbers<[1], [0], [0], [1], [0, 0, 1, 1], [], []>} : vector<8x1024xbf16>, vector<1024x128xbf16>, vector<8x128xf32> -> vector<8x128xf32>
    %14 = arith.addf %10, %13 : vector<8x128xf32>
    %c0_13 = arith.constant 0 : index
    %c0_14 = arith.constant 0 : index
    %15 = vector.load %arg9[%c0_13, %c0_14] : memref<8x128xf32, #tpu.memory_space<vmem>>, vector<8x128xf32>
    tpu.vector_store %arg9[%c0_13, %c0_14], %14 {strides = array<i32>} : memref<8x128xf32, #tpu.memory_space<vmem>>, vector<8x128xf32>,
    %c0_i32_15 = arith.constant 0 : i32
    %16 = arith.cmpi eq, %arg1, %c0_i32_15 : i32
    %17 = arith.extui %16 : i1 to i32
    %c0_i32_16 = arith.constant 0 : i32
    %18 = arith.cmpi ne, %17, %c0_i32_16 : i32
    scf.if %18 {
      %c0_17 = arith.constant 0 : index
      %c0_18 = arith.constant 0 : index
      %19 = vector.load %arg5[%c0_17, %c0_18] : memref<1x128xf32, #tpu.memory_space<vmem>>, vector<1x128xf32>
      %c0_19 = arith.constant 0 : index
      %c0_20 = arith.constant 0 : index
      %20 = vector.load %arg8[%c0_19, %c0_20] : memref<8x128xf32, #tpu.memory_space<vmem>>, vector<8x128xf32>
      %21 = vector.broadcast %19 : vector<1x128xf32> to vector<8x128xf32>
      %22 = arith.addf %20, %21 : vector<8x128xf32>
      %23 = arith.truncf %22 : vector<8x128xf32> to vector<8x128xbf16>
      %c0_21 = arith.constant 0 : index
      %c0_22 = arith.constant 0 : index
      %24 = vector.load %arg6[%c0_21, %c0_22] : memref<8x128xbf16, #tpu.memory_space<vmem>>, vector<8x128xbf16>
      tpu.vector_store %arg6[%c0_21, %c0_22], %23 {strides = array<i32>} : memref<8x128xbf16, #tpu.memory_space<vmem>>, vector<8x128xbf16>,
      %c0_23 = arith.constant 0 : index
      %c0_24 = arith.constant 0 : index
      %25 = vector.load %arg9[%c0_23, %c0_24] : memref<8x128xf32, #tpu.memory_space<vmem>>, vector<8x128xf32>
      %26 = vector.broadcast %19 : vector<1x128xf32> to vector<8x128xf32>
      %27 = arith.addf %25, %26 : vector<8x128xf32>
      %28 = arith.truncf %27 : vector<8x128xf32> to vector<8x128xbf16>
      %c0_25 = arith.constant 0 : index
      %c0_26 = arith.constant 0 : index
      %29 = vector.load %arg7[%c0_25, %c0_26] : memref<8x128xbf16, #tpu.memory_space<vmem>>, vector<8x128xbf16>
      tpu.vector_store %arg7[%c0_25, %c0_26], %28 {strides = array<i32>} : memref<8x128xbf16, #tpu.memory_space<vmem>>, vector<8x128xbf16>,
    } else {
    }
    return
  }
  func.func @transform_0(%arg0: i32, %arg1: i32) -> (i32, i32) {
    %c0_i32 = arith.constant 0 : i32
    return %arg0, %arg1 : i32, i32
  }
  func.func @transform_1(%arg0: i32, %arg1: i32) -> (i32, i32) {
    %c0_i32 = arith.constant 0 : i32
    return %arg0, %arg1 : i32, i32
  }
  func.func @transform_2(%arg0: i32, %arg1: i32) -> (i32, i32) {
    %c0_i32 = arith.constant 0 : i32
    %c0_i32_0 = arith.constant 0 : i32
    return %arg1, %c0_i32 : i32, i32
  }
  func.func @transform_3(%arg0: i32, %arg1: i32) -> (i32, i32) {
    %c0_i32 = arith.constant 0 : i32
    %c0_i32_0 = arith.constant 0 : i32
    %c0_i32_1 = arith.constant 0 : i32
    return %c0_i32, %c0_i32_0 : i32, i32
  }
  func.func @transform_4(%arg0: i32, %arg1: i32) -> (i32, i32) {
    %c0_i32 = arith.constant 0 : i32
    %c0_i32_0 = arith.constant 0 : i32
    return %arg0, %c0_i32 : i32, i32
  }
  func.func @transform_5(%arg0: i32, %arg1: i32) -> (i32, i32) {
    %c0_i32 = arith.constant 0 : i32
    %c0_i32_0 = arith.constant 0 : i32
    return %arg0, %c0_i32 : i32, i32
  }
}

module attributes {stable_mosaic.version = 11 : i64} {
  func.func @backbone_kernel(%arg0: i32, %arg1: i32, %arg2: memref<8x1024xf32, #tpu.memory_space<vmem>>, %arg3: memref<8x1024xf32, #tpu.memory_space<vmem>>, %arg4: memref<1024x128xbf16, #tpu.memory_space<vmem>>, %arg5: memref<1x128xf32, #tpu.memory_space<vmem>>, %arg6: memref<8x128xbf16, #tpu.memory_space<vmem>>, %arg7: memref<8x128xbf16, #tpu.memory_space<vmem>>, %arg8: memref<8x128xf32, #tpu.memory_space<vmem>>, %arg9: memref<8x128xf32, #tpu.memory_space<vmem>>) attributes {dimension_semantics = [#tpu.dimension_semantics<parallel>, #tpu.dimension_semantics<arbitrary>], iteration_bounds = array<i64: 1, 1>, scalar_prefetch = 0 : i64, scratch_operands = 2 : i64, tpu.core_type = #tpu.core_type<tc>, window_params = [{transform_indices = @transform_0, window_bounds = array<i64: 8, 1024>}, {transform_indices = @transform_1, window_bounds = array<i64: 8, 1024>}, {transform_indices = @transform_2, window_bounds = array<i64: 1024, 128>}, {pipeline_mode = #tpu.pipeline_mode<synchronous>, transform_indices = @transform_3, window_bounds = array<i64: 1, 128>}, {transform_indices = @transform_4, window_bounds = array<i64: 8, 128>}, {transform_indices = @transform_5, window_bounds = array<i64: 8, 128>}]} {
    %c0_i32 = arith.constant 0 : i32
    %0 = arith.cmpi eq, %arg1, %c0_i32 : i32
    %1 = arith.extui %0 : i1 to i32
    %c0_i32_0 = arith.constant 0 : i32
    %2 = arith.cmpi ne, %1, %c0_i32_0 : i32
    scf.if %2 {
      %cst_17 = arith.constant 0.000000e+00 : f32
      %19 = vector.broadcast %cst_17 : f32 to vector<8x128xf32>
      %c0_18 = arith.constant 0 : index
      %c0_19 = arith.constant 0 : index
      %20 = vector.load %arg8[%c0_18, %c0_19] : memref<8x128xf32, #tpu.memory_space<vmem>>, vector<8x128xf32>
      tpu.vector_store %arg8[%c0_18, %c0_19], %19 {strides = array<i32>} : memref<8x128xf32, #tpu.memory_space<vmem>>, vector<8x128xf32>,
      %cst_20 = arith.constant 0.000000e+00 : f32
      %21 = vector.broadcast %cst_20 : f32 to vector<8x128xf32>
      %c0_21 = arith.constant 0 : index
      %c0_22 = arith.constant 0 : index
      %22 = vector.load %arg9[%c0_21, %c0_22] : memref<8x128xf32, #tpu.memory_space<vmem>>, vector<8x128xf32>
      tpu.vector_store %arg9[%c0_21, %c0_22], %21 {strides = array<i32>} : memref<8x128xf32, #tpu.memory_space<vmem>>, vector<8x128xf32>,
    } else {
    }
    %c0 = arith.constant 0 : index
    %c0_1 = arith.constant 0 : index
    %3 = vector.load %arg4[%c0, %c0_1] : memref<1024x128xbf16, #tpu.memory_space<vmem>>, vector<1024x128xbf16>
    %c0_2 = arith.constant 0 : index
    %c0_3 = arith.constant 0 : index
    %4 = vector.load %arg8[%c0_2, %c0_3] : memref<8x128xf32, #tpu.memory_space<vmem>>, vector<8x128xf32>
    %c0_4 = arith.constant 0 : index
    %c0_5 = arith.constant 0 : index
    %5 = vector.load %arg2[%c0_4, %c0_5] : memref<8x1024xf32, #tpu.memory_space<vmem>>, vector<8x1024xf32>
    %6 = arith.truncf %5 : vector<8x1024xf32> to vector<8x1024xbf16>
    %cst = arith.constant dense<0.000000e+00> : vector<8x128xf32>
    %7 = tpu.matmul %6, %3, %cst {dimension_numbers = #tpu.dot_dimension_numbers<[1], [0], [0], [1], [0, 0, 1, 1], [], []>} : vector<8x1024xbf16>, vector<1024x128xbf16>, vector<8x128xf32> -> vector<8x128xf32>
    %8 = arith.addf %4, %7 : vector<8x128xf32>
    %c0_6 = arith.constant 0 : index
    %c0_7 = arith.constant 0 : index
    %9 = vector.load %arg8[%c0_6, %c0_7] : memref<8x128xf32, #tpu.memory_space<vmem>>, vector<8x128xf32>
    tpu.vector_store %arg8[%c0_6, %c0_7], %8 {strides = array<i32>} : memref<8x128xf32, #tpu.memory_space<vmem>>, vector<8x128xf32>,
    %c0_8 = arith.constant 0 : index
    %c0_9 = arith.constant 0 : index
    %10 = vector.load %arg9[%c0_8, %c0_9] : memref<8x128xf32, #tpu.memory_space<vmem>>, vector<8x128xf32>
    %c0_10 = arith.constant 0 : index
    %c0_11 = arith.constant 0 : index
    %11 = vector.load %arg3[%c0_10, %c0_11] : memref<8x1024xf32, #tpu.memory_space<vmem>>, vector<8x1024xf32>
    %12 = arith.truncf %11 : vector<8x1024xf32> to vector<8x1024xbf16>
    %cst_12 = arith.constant dense<0.000000e+00> : vector<8x128xf32>
    %13 = tpu.matmul %12, %3, %cst_12 {dimension_numbers = #tpu.dot_dimension_numbers<[1], [0], [0], [1], [0, 0, 1, 1], [], []>} : vector<8x1024xbf16>, vector<1024x128xbf16>, vector<8x128xf32> -> vector<8x128xf32>
    %14 = arith.addf %10, %13 : vector<8x128xf32>
    %c0_13 = arith.constant 0 : index
    %c0_14 = arith.constant 0 : index
    %15 = vector.load %arg9[%c0_13, %c0_14] : memref<8x128xf32, #tpu.memory_space<vmem>>, vector<8x128xf32>
    tpu.vector_store %arg9[%c0_13, %c0_14], %14 {strides = array<i32>} : memref<8x128xf32, #tpu.memory_space<vmem>>, vector<8x128xf32>,
    %c0_i32_15 = arith.constant 0 : i32
    %16 = arith.cmpi eq, %arg1, %c0_i32_15 : i32
    %17 = arith.extui %16 : i1 to i32
    %c0_i32_16 = arith.constant 0 : i32
    %18 = arith.cmpi ne, %17, %c0_i32_16 : i32
    scf.if %18 {
      %c0_17 = arith.constant 0 : index
      %c0_18 = arith.constant 0 : index
      %19 = vector.load %arg5[%c0_17, %c0_18] : memref<1x128xf32, #tpu.memory_space<vmem>>, vector<1x128xf32>
      %c0_19 = arith.constant 0 : index
      %c0_20 = arith.constant 0 : index
      %20 = vector.load %arg8[%c0_19, %c0_20] : memref<8x128xf32, #tpu.memory_space<vmem>>, vector<8x128xf32>
      %21 = vector.broadcast %19 : vector<1x128xf32> to vector<8x128xf32>
      %22 = arith.addf %20, %21 : vector<8x128xf32>
      %23 = arith.truncf %22 : vector<8x128xf32> to vector<8x128xbf16>
      %c0_21 = arith.constant 0 : index
      %c0_22 = arith.constant 0 : index
      %24 = vector.load %arg6[%c0_21, %c0_22] : memref<8x128xbf16, #tpu.memory_space<vmem>>, vector<8x128xbf16>
      tpu.vector_store %arg6[%c0_21, %c0_22], %23 {strides = array<i32>} : memref<8x128xbf16, #tpu.memory_space<vmem>>, vector<8x128xbf16>,
      %c0_23 = arith.constant 0 : index
      %c0_24 = arith.constant 0 : index
      %25 = vector.load %arg9[%c0_23, %c0_24] : memref<8x128xf32, #tpu.memory_space<vmem>>, vector<8x128xf32>
      %26 = vector.broadcast %19 : vector<1x128xf32> to vector<8x128xf32>
      %27 = arith.addf %25, %26 : vector<8x128xf32>
      %28 = arith.truncf %27 : vector<8x128xf32> to vector<8x128xbf16>
      %c0_25 = arith.constant 0 : index
      %c0_26 = arith.constant 0 : index
      %29 = vector.load %arg7[%c0_25, %c0_26] : memref<8x128xbf16, #tpu.memory_space<vmem>>, vector<8x128xbf16>
      tpu.vector_store %arg7[%c0_25, %c0_26], %28 {strides = array<i32>} : memref<8x128xbf16, #tpu.memory_space<vmem>>, vector<8x128xbf16>,
    } else {
    }
    return
  }
  func.func @transform_0(%arg0: i32, %arg1: i32) -> (i32, i32) {
    %c0_i32 = arith.constant 0 : i32
    return %arg0, %arg1 : i32, i32
  }
  func.func @transform_1(%arg0: i32, %arg1: i32) -> (i32, i32) {
    %c0_i32 = arith.constant 0 : i32
    return %arg0, %arg1 : i32, i32
  }
  func.func @transform_2(%arg0: i32, %arg1: i32) -> (i32, i32) {
    %c0_i32 = arith.constant 0 : i32
    %c0_i32_0 = arith.constant 0 : i32
    return %arg1, %c0_i32 : i32, i32
  }
  func.func @transform_3(%arg0: i32, %arg1: i32) -> (i32, i32) {
    %c0_i32 = arith.constant 0 : i32
    %c0_i32_0 = arith.constant 0 : i32
    %c0_i32_1 = arith.constant 0 : i32
    return %c0_i32, %c0_i32_0 : i32, i32
  }
  func.func @transform_4(%arg0: i32, %arg1: i32) -> (i32, i32) {
    %c0_i32 = arith.constant 0 : i32
    %c0_i32_0 = arith.constant 0 : i32
    return %arg0, %c0_i32 : i32, i32
  }
  func.func @transform_5(%arg0: i32, %arg1: i32) -> (i32, i32) {
    %c0_i32 = arith.constant 0 : i32
    %c0_i32_0 = arith.constant 0 : i32
    return %arg0, %c0_i32 : i32, i32
  }
}

</mosaic_0001>

<llo_original>
// kernel: tpu_custom_call.1
$region0: #{tpu_custom_call.1}
  #allocation0 [shape = 'u32[]', space=smem, size = 0x4, offset = 0x4, fixed_abs, tag = 'smem constant byte address 0x4 - core index']
  #allocation1 [shape = 'u32[144,128]{1,0:T(1,128)}', space=vmem, size = 0x12000, scoped, tag = 'internal scratch']
  #allocation2 [shape = 'f32[8,128]{1,0:T(8,128)}', space=vmem, size = 0x1000, scoped, tag = 'scratch operand']
  #allocation3 [shape = 'f32[8,128]{1,0:T(8,128)}', space=vmem, size = 0x1000, scoped, tag = 'scratch operand']
  %s0 = inlined_call_operand.hbm [shape: f32[8,1024], index: 0, kind: input, shape index: {}]
  %s1 = inlined_call_operand.hbm [shape: f32[8,1024], index: 1, kind: input, shape index: {}]
  %s2 = inlined_call_operand.hbm [shape: bf16[1024,128], index: 2, kind: input, shape index: {}]
  %s3 = inlined_call_operand.vmem [shape: f32[1,128], index: 3, kind: input, shape index: {}]
  %s4 = inlined_call_operand.hbm [shape: bf16[8,128], index: 4, kind: output, shape index: {0}]
  %s5 = inlined_call_operand.hbm [shape: bf16[8,128], index: 5, kind: output, shape index: {1}]
  %6 = xla_tuple %s4, %s5
  %s7 = sld [smem:[#allocation0]]
  $region54: #{tpu_custom_call.1} parent=0
    _
  %s9 = ssub.s32 1, %s7
  %s10 = scalar_select 0, %s9, %s7
  $region1: #{tpu_custom_call.1} parent=0
    #allocation4 [shape = 'u8[32768]{0}', space=vmem, size = 0x8000, scoped, tag = 'input window, operand 0, single buffered']
    #allocation5 [shape = 's32[1]{0}', space=sflag, size = 0x4, scoped, tag = 'scoped memory for tpu_custom_call.1']
    #allocation6 [shape = 's32[1]{0}', space=sflag, size = 0x4, scoped, tag = 'scoped memory for tpu_custom_call.1']
    #allocation7 [shape = 'u8[32768]{0}', space=vmem, size = 0x8000, scoped, tag = 'input window, operand 1, single buffered']
    #allocation8 [shape = 's32[1]{0}', space=sflag, size = 0x4, scoped, tag = 'scoped memory for tpu_custom_call.1']
    #allocation9 [shape = 'u8[262144]{0}', space=vmem, size = 0x40000, scoped, tag = 'input window, operand 2, single buffered']
    #allocation10 [shape = 'u8[2048]{0}', space=vmem, size = 0x800, scoped, tag = 'output window, operand 0, single buffered']
    #allocation11 [shape = 'u8[2048]{0}', space=vmem, size = 0x800, scoped, tag = 'output window, operand 1, single buffered']
    #allocation12 [shape = 's32[1]{0}', space=sflag, size = 0x4, scoped, tag = 'scoped memory for tpu_custom_call.1']
    %11 = vsyncpa [#allocation5], 0
    %12 = vsyncpa [#allocation8], 0
    %13 = vsyncpa [#allocation6], 0
    %14 = vsyncpa [#allocation12], 0
    // Predicated region
    $region2: #{tpu_custom_call.1} parent=1 // pred_check
      _
    $region3: #{tpu_custom_call.1} parent=1 // pred_check_branch
      %16 = sbr.rel (0) target = $region5
    $region4: #{tpu_custom_call.1} parent=1 // pred_region
      %s18 = ssub.s32 1024, 1024
      %19 = vsyncadd [#allocation5], %s18
      %s21 = sshll.u32 [#allocation4], 4
      %s22 = int_to_ptr.vmem [resolvable:$true] %s21
      %24 = dma.hbm_to_vmem [thread:$0]  %s0, 1024, %s22, [#allocation5]
    $region5: #{tpu_custom_call.1} parent=1 // pred_fallthru
      _
    // Predicated region
    $region6: #{tpu_custom_call.1} parent=1 // pred_check
      _
    $region7: #{tpu_custom_call.1} parent=1 // pred_check_branch
      %26 = sbr.rel (0) target = $region9
    $region8: #{tpu_custom_call.1} parent=1 // pred_region
      %s28 = ssub.s32 1024, 1024
      %29 = vsyncadd [#allocation8], %s28
      %s31 = sshll.u32 [#allocation7], 4
      %s32 = int_to_ptr.vmem [resolvable:$true] %s31
      %34 = dma.hbm_to_vmem [thread:$0]  %s1, 1024, %s32, [#allocation8]
    $region9: #{tpu_custom_call.1} parent=1 // pred_fallthru
      _
    // Predicated region
    $region10: #{tpu_custom_call.1} parent=1 // pred_check
      _
    $region11: #{tpu_custom_call.1} parent=1 // pred_check_branch
      %36 = sbr.rel (0) target = $region13
    $region12: #{tpu_custom_call.1} parent=1 // pred_region
      %s38 = ssub.s32 8192, 8192
      %39 = vsyncadd [#allocation8], %s38
      %s40 = sshll.u32 [#allocation9], 4
      %s41 = int_to_ptr.vmem [resolvable:$true] %s40
      %46 = dma.hbm_to_vmem [thread:$0]  %s2, 8192, %s41, [#allocation8], 64, 64, 4
    $region13: #{tpu_custom_call.1} parent=1 // pred_fallthru
      _
    // Predicated region
    $region14: #{tpu_custom_call.1} parent=1 // pred_check
      _
    $region15: #{tpu_custom_call.1} parent=1 // pred_check_branch
      %48 = sbr.rel (0) target = $region17
    $region16: #{tpu_custom_call.1} parent=1 // pred_region
      _
    $region17: #{tpu_custom_call.1} parent=1 // pred_fallthru
      _
    // Predicated region
    $region18: #{tpu_custom_call.1} parent=1 // pred_check
      _
    $region19: #{tpu_custom_call.1} parent=1 // pred_check_branch
      %50 = sbr.rel (0) target = $region21
    $region20: #{tpu_custom_call.1} parent=1 // pred_region
      %51 = dma.done [#allocation5], 1024
    $region21: #{tpu_custom_call.1} parent=1 // pred_fallthru
      _
    // Predicated region
    $region22: #{tpu_custom_call.1} parent=1 // pred_check
      _
    $region23: #{tpu_custom_call.1} parent=1 // pred_check_branch
      %53 = sbr.rel (0) target = $region25
    $region24: #{tpu_custom_call.1} parent=1 // pred_region
      %54 = dma.done [#allocation8], 1024
    $region25: #{tpu_custom_call.1} parent=1 // pred_fallthru
      _
    // Predicated region
    $region26: #{tpu_custom_call.1} parent=1 // pred_check
      _
    $region27: #{tpu_custom_call.1} parent=1 // pred_check_branch
      %56 = sbr.rel (0) target = $region29
    $region28: #{tpu_custom_call.1} parent=1 // pred_region
      %57 = dma.done [#allocation8], 8192
    $region29: #{tpu_custom_call.1} parent=1 // pred_fallthru
      _
    %p59 = scmp.eq.s32.totalorder 0, 0
    // Predicated region
    $region30: #{tpu_custom_call.1} parent=1 // pred_check
      %p60 = pneg %p59
    $region31: #{tpu_custom_call.1} parent=1 // pred_check_branch
      %62 = sbr.rel (%p60) target = $region33
    $region32: #{tpu_custom_call.1} parent=1 // pred_region
      %63 = vst [vmem:[#allocation2] sm:$0xff] 0.0
      %64 = vst [vmem:[#allocation3] sm:$0xff] 0.0
    $region33: #{tpu_custom_call.1} parent=1 // pred_fallthru
      _
    %v65 = vld [vmem:[#allocation9] sm:$0xf]
    %v66 = vld [vmem:[#allocation9 + $0x4] sm:$0xf]
    %v67 = vld [vmem:[#allocation9 + $0x8] sm:$0xf]
    %v68 = vld [vmem:[#allocation9 + $0xc] sm:$0xf]
    %v69 = vld [vmem:[#allocation9 + $0x10] sm:$0xf]
    %v70 = vld [vmem:[#allocation9 + $0x14] sm:$0xf]
    %v71 = vld [vmem:[#allocation9 + $0x18] sm:$0xf]
    %v72 = vld [vmem:[#allocation9 + $0x1c] sm:$0xf]
    %v73 = vld [vmem:[#allocation9 + $0x20] sm:$0xf]
    %v74 = vld [vmem:[#allocation9 + $0x24] sm:$0xf]
    %v75 = vld [vmem:[#allocation9 + $0x28] sm:$0xf]
    %v76 = vld [vmem:[#allocation9 + $0x2c] sm:$0xf]
    %v77 = vld [vmem:[#allocation9 + $0x30] sm:$0xf]
    %v78 = vld [vmem:[#allocation9 + $0x34] sm:$0xf]
    %v79 = vld [vmem:[#allocation9 + $0x38] sm:$0xf]
    %v80 = vld [vmem:[#allocation9 + $0x3c] sm:$0xf]
    %v81 = vld [vmem:[#allocation9 + $0x40] sm:$0xf]
    %v82 = vld [vmem:[#allocation9 + $0x44] sm:$0xf]
    %v83 = vld [vmem:[#allocation9 + $0x48] sm:$0xf]
    %v84 = vld [vmem:[#allocation9 + $0x4c] sm:$0xf]
    %v85 = vld [vmem:[#allocation9 + $0x50] sm:$0xf]
    %v86 = vld [vmem:[#allocation9 + $0x54] sm:$0xf]
    %v87 = vld [vmem:[#allocation9 + $0x58] sm:$0xf]
    %v88 = vld [vmem:[#allocation9 + $0x5c] sm:$0xf]
    %v89 = vld [vmem:[#allocation9 + $0x60] sm:$0xf]
    %v90 = vld [vmem:[#allocation9 + $0x64] sm:$0xf]
    %v91 = vld [vmem:[#allocation9 + $0x68] sm:$0xf]
    %v92 = vld [vmem:[#allocation9 + $0x6c] sm:$0xf]
    %v93 = vld [vmem:[#allocation9 + $0x70] sm:$0xf]
    %v94 = vld [vmem:[#allocation9 + $0x74] sm:$0xf]
    %v95 = vld [vmem:[#allocation9 + $0x78] sm:$0xf]
    %v96 = vld [vmem:[#allocation9 + $0x7c] sm:$0xf]
    %v97 = vld [vmem:[#allocation9 + $0x80] sm:$0xf]
    %v98 = vld [vmem:[#allocation9 + $0x84] sm:$0xf]
    %v99 = vld [vmem:[#allocation9 + $0x88] sm:$0xf]
    %v100 = vld [vmem:[#allocation9 + $0x8c] sm:$0xf]
    %v101 = vld [vmem:[#allocation9 + $0x90] sm:$0xf]
    %v102 = vld [vmem:[#allocation9 + $0x94] sm:$0xf]
    %v103 = vld [vmem:[#allocation9 + $0x98] sm:$0xf]
    %v104 = vld [vmem:[#allocation9 + $0x9c] sm:$0xf]
    %v105 = vld [vmem:[#allocation9 + $0xa0] sm:$0xf]
    %v106 = vld [vmem:[#allocation9 + $0xa4] sm:$0xf]
    %v107 = vld [vmem:[#allocation9 + $0xa8] sm:$0xf]
    %v108 = vld [vmem:[#allocation9 + $0xac] sm:$0xf]
    %v109 = vld [vmem:[#allocation9 + $0xb0] sm:$0xf]
    %v110 = vld [vmem:[#allocation9 + $0xb4] sm:$0xf]
    %v111 = vld [vmem:[#allocation9 + $0xb8] sm:$0xf]
    %v112 = vld [vmem:[#allocation9 + $0xbc] sm:$0xf]
    %v113 = vld [vmem:[#allocation9 + $0xc0] sm:$0xf]
    %v114 = vld [vmem:[#allocation9 + $0xc4] sm:$0xf]
    %v115 = vld [vmem:[#allocation9 + $0xc8] sm:$0xf]
    %v116 = vld [vmem:[#allocation9 + $0xcc] sm:$0xf]
    %v117 = vld [vmem:[#allocation9 + $0xd0] sm:$0xf]
    %v118 = vld [vmem:[#allocation9 + $0xd4] sm:$0xf]
    %v119 = vld [vmem:[#allocation9 + $0xd8] sm:$0xf]
    %v120 = vld [vmem:[#allocation9 + $0xdc] sm:$0xf]
    %v121 = vld [vmem:[#allocation9 + $0xe0] sm:$0xf]
    %v122 = vld [vmem:[#allocation9 + $0xe4] sm:$0xf]
    %v123 = vld [vmem:[#allocation9 + $0xe8] sm:$0xf]
    %v124 = vld [vmem:[#allocation9 + $0xec] sm:$0xf]
    %v125 = vld [vmem:[#allocation9 + $0xf0] sm:$0xf]
    %v126 = vld [vmem:[#allocation9 + $0xf4] sm:$0xf]
    %v127 = vld [vmem:[#allocation9 + $0xf8] sm:$0xf]
    %v128 = vld [vmem:[#allocation9 + $0xfc] sm:$0xf]
    %v129 = vld [vmem:[#allocation9 + $0x100] sm:$0xf]
    %v130 = vld [vmem:[#allocation9 + $0x104] sm:$0xf]
    %v131 = vld [vmem:[#allocation9 + $0x108] sm:$0xf]
    %v132 = vld [vmem:[#allocation9 + $0x10c] sm:$0xf]
    %v133 = vld [vmem:[#allocation9 + $0x110] sm:$0xf]
    %v134 = vld [vmem:[#allocation9 + $0x114] sm:$0xf]
    %v135 = vld [vmem:[#allocation9 + $0x118] sm:$0xf]
    %v136 = vld [vmem:[#allocation9 + $0x11c] sm:$0xf]
    %v137 = vld [vmem:[#allocation9 + $0x120] sm:$0xf]
    %v138 = vld [vmem:[#allocation9 + $0x124] sm:$0xf]
    %v139 = vld [vmem:[#allocation9 + $0x128] sm:$0xf]
    %v140 = vld [vmem:[#allocation9 + $0x12c] sm:$0xf]
    %v141 = vld [vmem:[#allocation9 + $0x130] sm:$0xf]
    %v142 = vld [vmem:[#allocation9 + $0x134] sm:$0xf]
    %v143 = vld [vmem:[#allocation9 + $0x138] sm:$0xf]
    %v144 = vld [vmem:[#allocation9 + $0x13c] sm:$0xf]
    %v145 = vld [vmem:[#allocation9 + $0x140] sm:$0xf]
    %v146 = vld [vmem:[#allocation9 + $0x144] sm:$0xf]
    %v147 = vld [vmem:[#allocation9 + $0x148] sm:$0xf]
    %v148 = vld [vmem:[#allocation9 + $0x14c] sm:$0xf]
    %v149 = vld [vmem:[#allocation9 + $0x150] sm:$0xf]
    %v150 = vld [vmem:[#allocation9 + $0x154] sm:$0xf]
    %v151 = vld [vmem:[#allocation9 + $0x158] sm:$0xf]
    %v152 = vld [vmem:[#allocation9 + $0x15c] sm:$0xf]
    %v153 = vld [vmem:[#allocation9 + $0x160] sm:$0xf]
    %v154 = vld [vmem:[#allocation9 + $0x164] sm:$0xf]
    %v155 = vld [vmem:[#allocation9 + $0x168] sm:$0xf]
    %v156 = vld [vmem:[#allocation9 + $0x16c] sm:$0xf]
    %v157 = vld [vmem:[#allocation9 + $0x170] sm:$0xf]
    %v158 = vld [vmem:[#allocation9 + $0x174] sm:$0xf]
    %v159 = vld [vmem:[#allocation9 + $0x178] sm:$0xf]
    %v160 = vld [vmem:[#allocation9 + $0x17c] sm:$0xf]
    %v161 = vld [vmem:[#allocation9 + $0x180] sm:$0xf]
    %v162 = vld [vmem:[#allocation9 + $0x184] sm:$0xf]
    %v163 = vld [vmem:[#allocation9 + $0x188] sm:$0xf]
    %v164 = vld [vmem:[#allocation9 + $0x18c] sm:$0xf]
    %v165 = vld [vmem:[#allocation9 + $0x190] sm:$0xf]
    %v166 = vld [vmem:[#allocation9 + $0x194] sm:$0xf]
    %v167 = vld [vmem:[#allocation9 + $0x198] sm:$0xf]
    %v168 = vld [vmem:[#allocation9 + $0x19c] sm:$0xf]
    %v169 = vld [vmem:[#allocation9 + $0x1a0] sm:$0xf]
    %v170 = vld [vmem:[#allocation9 + $0x1a4] sm:$0xf]
    %v171 = vld [vmem:[#allocation9 + $0x1a8] sm:$0xf]
    %v172 = vld [vmem:[#allocation9 + $0x1ac] sm:$0xf]
    %v173 = vld [vmem:[#allocation9 + $0x1b0] sm:$0xf]
    %v174 = vld [vmem:[#allocation9 + $0x1b4] sm:$0xf]
    %v175 = vld [vmem:[#allocation9 + $0x1b8] sm:$0xf]
    %v176 = vld [vmem:[#allocation9 + $0x1bc] sm:$0xf]
    %v177 = vld [vmem:[#allocation9 + $0x1c0] sm:$0xf]
    %v178 = vld [vmem:[#allocation9 + $0x1c4] sm:$0xf]
    %v179 = vld [vmem:[#allocation9 + $0x1c8] sm:$0xf]
    %v180 = vld [vmem:[#allocation9 + $0x1cc] sm:$0xf]
    %v181 = vld [vmem:[#allocation9 + $0x1d0] sm:$0xf]
    %v182 = vld [vmem:[#allocation9 + $0x1d4] sm:$0xf]
    %v183 = vld [vmem:[#allocation9 + $0x1d8] sm:$0xf]
    %v184 = vld [vmem:[#allocation9 + $0x1dc] sm:$0xf]
    %v185 = vld [vmem:[#allocation9 + $0x1e0] sm:$0xf]
    %v186 = vld [vmem:[#allocation9 + $0x1e4] sm:$0xf]
    %v187 = vld [vmem:[#allocation9 + $0x1e8] sm:$0xf]
    %v188 = vld [vmem:[#allocation9 + $0x1ec] sm:$0xf]
    %v189 = vld [vmem:[#allocation9 + $0x1f0] sm:$0xf]
    %v190 = vld [vmem:[#allocation9 + $0x1f4] sm:$0xf]
    %v191 = vld [vmem:[#allocation9 + $0x1f8] sm:$0xf]
    %v192 = vld [vmem:[#allocation9 + $0x1fc] sm:$0xf]
    %v193 = vld [vmem:[#allocation2] sm:$0xff]
    %v194 = vld [vmem:[#allocation4] sm:$0xff]
    %v195 = vld [vmem:[#allocation4 + $0x8] sm:$0xff]
    %v196 = vld [vmem:[#allocation4 + $0x10] sm:$0xff]
    %v197 = vld [vmem:[#allocation4 + $0x18] sm:$0xff]
    %v198 = vld [vmem:[#allocation4 + $0x20] sm:$0xff]
    %v199 = vld [vmem:[#allocation4 + $0x28] sm:$0xff]
    %v200 = vld [vmem:[#allocation4 + $0x30] sm:$0xff]
    %v201 = vld [vmem:[#allocation4 + $0x38] sm:$0xff]
    %v202 = vpack.c.bf16 %v194, %v194
    %v203 = vpack.c.bf16 %v195, %v195
    %v204 = vpack.c.bf16 %v196, %v196
    %v205 = vpack.c.bf16 %v197, %v197
    %v206 = vpack.c.bf16 %v198, %v198
    %v207 = vpack.c.bf16 %v199, %v199
    %v208 = vpack.c.bf16 %v200, %v200
    %v209 = vpack.c.bf16 %v201, %v201
    %v338 = vunpack.c.l.b16 %v65
    %v339 = vunpack.c.l.b16 %v66
    %v340 = vunpack.c.l.b16 %v67
    %v341 = vunpack.c.l.b16 %v68
    %v342 = vunpack.c.l.b16 %v69
    %v343 = vunpack.c.l.b16 %v70
    %v344 = vunpack.c.l.b16 %v71
    %v345 = vunpack.c.l.b16 %v72
    %v346 = vunpack.c.l.b16 %v73
    %v347 = vunpack.c.l.b16 %v74
    %v348 = vunpack.c.l.b16 %v75
    %v349 = vunpack.c.l.b16 %v76
    %v350 = vunpack.c.l.b16 %v77
    %v351 = vunpack.c.l.b16 %v78
    %v352 = vunpack.c.l.b16 %v79
    %v353 = vunpack.c.l.b16 %v80
    %v354 = vunpack.c.l.b16 %v81
    %v355 = vunpack.c.l.b16 %v82
    %v356 = vunpack.c.l.b16 %v83
    %v357 = vunpack.c.l.b16 %v84
    %v358 = vunpack.c.l.b16 %v85
    %v359 = vunpack.c.l.b16 %v86
    %v360 = vunpack.c.l.b16 %v87
    %v361 = vunpack.c.l.b16 %v88
    %v362 = vunpack.c.l.b16 %v89
    %v363 = vunpack.c.l.b16 %v90
    %v364 = vunpack.c.l.b16 %v91
    %v365 = vunpack.c.l.b16 %v92
    %v366 = vunpack.c.l.b16 %v93
    %v367 = vunpack.c.l.b16 %v94
    %v368 = vunpack.c.l.b16 %v95
    %v369 = vunpack.c.l.b16 %v96
    %v370 = vunpack.c.l.b16 %v97
    %v371 = vunpack.c.l.b16 %v98
    %v372 = vunpack.c.l.b16 %v99
    %v373 = vunpack.c.l.b16 %v100
    %v374 = vunpack.c.l.b16 %v101
    %v375 = vunpack.c.l.b16 %v102
    %v376 = vunpack.c.l.b16 %v103
    %v377 = vunpack.c.l.b16 %v104
    %v378 = vunpack.c.l.b16 %v105
    %v379 = vunpack.c.l.b16 %v106
    %v380 = vunpack.c.l.b16 %v107
    %v381 = vunpack.c.l.b16 %v108
    %v382 = vunpack.c.l.b16 %v109
    %v383 = vunpack.c.l.b16 %v110
    %v384 = vunpack.c.l.b16 %v111
    %v385 = vunpack.c.l.b16 %v112
    %v386 = vunpack.c.l.b16 %v113
    %v387 = vunpack.c.l.b16 %v114
    %v388 = vunpack.c.l.b16 %v115
    %v389 = vunpack.c.l.b16 %v116
    %v390 = vunpack.c.l.b16 %v117
    %v391 = vunpack.c.l.b16 %v118
    %v392 = vunpack.c.l.b16 %v119
    %v393 = vunpack.c.l.b16 %v120
    %v394 = vunpack.c.l.b16 %v121
    %v395 = vunpack.c.l.b16 %v122
    %v396 = vunpack.c.l.b16 %v123
    %v397 = vunpack.c.l.b16 %v124
    %v398 = vunpack.c.l.b16 %v125
    %v399 = vunpack.c.l.b16 %v126
    %v400 = vunpack.c.l.b16 %v127
    %v401 = vunpack.c.l.b16 %v128
    %v402 = vunpack.c.l.b16 %v129
    %v403 = vunpack.c.l.b16 %v130
    %v404 = vunpack.c.l.b16 %v131
    %v405 = vunpack.c.l.b16 %v132
    %v406 = vunpack.c.l.b16 %v133
    %v407 = vunpack.c.l.b16 %v134
    %v408 = vunpack.c.l.b16 %v135
    %v409 = vunpack.c.l.b16 %v136
    %v410 = vunpack.c.l.b16 %v137
    %v411 = vunpack.c.l.b16 %v138
    %v412 = vunpack.c.l.b16 %v139
    %v413 = vunpack.c.l.b16 %v140
    %v414 = vunpack.c.l.b16 %v141
    %v415 = vunpack.c.l.b16 %v142
    %v416 = vunpack.c.l.b16 %v143
    %v417 = vunpack.c.l.b16 %v144
    %v418 = vunpack.c.l.b16 %v145
    %v419 = vunpack.c.l.b16 %v146
    %v420 = vunpack.c.l.b16 %v147
    %v421 = vunpack.c.l.b16 %v148
    %v422 = vunpack.c.l.b16 %v149
    %v423 = vunpack.c.l.b16 %v150
    %v424 = vunpack.c.l.b16 %v151
    %v425 = vunpack.c.l.b16 %v152
    %v426 = vunpack.c.l.b16 %v153
    %v427 = vunpack.c.l.b16 %v154
    %v428 = vunpack.c.l.b16 %v155
    %v429 = vunpack.c.l.b16 %v156
    %v430 = vunpack.c.l.b16 %v157
    %v431 = vunpack.c.l.b16 %v158
    %v432 = vunpack.c.l.b16 %v159
    %v433 = vunpack.c.l.b16 %v160
    %v434 = vunpack.c.l.b16 %v161
    %v435 = vunpack.c.l.b16 %v162
    %v436 = vunpack.c.l.b16 %v163
    %v437 = vunpack.c.l.b16 %v164
    %v438 = vunpack.c.l.b16 %v165
    %v439 = vunpack.c.l.b16 %v166
    %v440 = vunpack.c.l.b16 %v167
    %v441 = vunpack.c.l.b16 %v168
    %v442 = vunpack.c.l.b16 %v169
    %v443 = vunpack.c.l.b16 %v170
    %v444 = vunpack.c.l.b16 %v171
    %v445 = vunpack.c.l.b16 %v172
    %v446 = vunpack.c.l.b16 %v173
    %v447 = vunpack.c.l.b16 %v174
    %v448 = vunpack.c.l.b16 %v175
    %v449 = vunpack.c.l.b16 %v176
    %v450 = vunpack.c.l.b16 %v177
    %v451 = vunpack.c.l.b16 %v178
    %v452 = vunpack.c.l.b16 %v179
    %v453 = vunpack.c.l.b16 %v180
    %v454 = vunpack.c.l.b16 %v181
    %v455 = vunpack.c.l.b16 %v182
    %v456 = vunpack.c.l.b16 %v183
    %v457 = vunpack.c.l.b16 %v184
    %v458 = vunpack.c.l.b16 %v185
    %v459 = vunpack.c.l.b16 %v186
    %v460 = vunpack.c.l.b16 %v187
    %v461 = vunpack.c.l.b16 %v188
    %v462 = vunpack.c.l.b16 %v189
    %v463 = vunpack.c.l.b16 %v190
    %v464 = vunpack.c.l.b16 %v191
    %v465 = vunpack.c.l.b16 %v192
    %v466 = vpack.c.b16 %v339, %v338
    %v467 = vpack.c.b16 %v341, %v340
    %v468 = vpack.c.b16 %v343, %v342
    %v469 = vpack.c.b16 %v345, %v344
    %v470 = vpack.c.b16 %v347, %v346
    %v471 = vpack.c.b16 %v349, %v348
    %v472 = vpack.c.b16 %v351, %v350
    %v473 = vpack.c.b16 %v353, %v352
    %v474 = vpack.c.b16 %v355, %v354
    %v475 = vpack.c.b16 %v357, %v356
    %v476 = vpack.c.b16 %v359, %v358
    %v477 = vpack.c.b16 %v361, %v360
    %v478 = vpack.c.b16 %v363, %v362
    %v479 = vpack.c.b16 %v365, %v364
    %v480 = vpack.c.b16 %v367, %v366
    %v481 = vpack.c.b16 %v369, %v368
    %v482 = vpack.c.b16 %v371, %v370
    %v483 = vpack.c.b16 %v373, %v372
    %v484 = vpack.c.b16 %v375, %v374
    %v485 = vpack.c.b16 %v377, %v376
    %v486 = vpack.c.b16 %v379, %v378
    %v487 = vpack.c.b16 %v381, %v380
    %v488 = vpack.c.b16 %v383, %v382
    %v489 = vpack.c.b16 %v385, %v384
    %v490 = vpack.c.b16 %v387, %v386
    %v491 = vpack.c.b16 %v389, %v388
    %v492 = vpack.c.b16 %v391, %v390
    %v493 = vpack.c.b16 %v393, %v392
    %v494 = vpack.c.b16 %v395, %v394
    %v495 = vpack.c.b16 %v397, %v396
    %v496 = vpack.c.b16 %v399, %v398
    %v497 = vpack.c.b16 %v401, %v400
    %v498 = vpack.c.b16 %v403, %v402
    %v499 = vpack.c.b16 %v405, %v404
    %v500 = vpack.c.b16 %v407, %v406
    %v501 = vpack.c.b16 %v409, %v408
    %v502 = vpack.c.b16 %v411, %v410
    %v503 = vpack.c.b16 %v413, %v412
    %v504 = vpack.c.b16 %v415, %v414
    %v505 = vpack.c.b16 %v417, %v416
    %v506 = vpack.c.b16 %v419, %v418
    %v507 = vpack.c.b16 %v421, %v420
    %v508 = vpack.c.b16 %v423, %v422
    %v509 = vpack.c.b16 %v425, %v424
    %v510 = vpack.c.b16 %v427, %v426
    %v511 = vpack.c.b16 %v429, %v428
    %v512 = vpack.c.b16 %v431, %v430
    %v513 = vpack.c.b16 %v433, %v432
    %v514 = vpack.c.b16 %v435, %v434
    %v515 = vpack.c.b16 %v437, %v436
    %v516 = vpack.c.b16 %v439, %v438
    %v517 = vpack.c.b16 %v441, %v440
    %v518 = vpack.c.b16 %v443, %v442
    %v519 = vpack.c.b16 %v445, %v444
    %v520 = vpack.c.b16 %v447, %v446
    %v521 = vpack.c.b16 %v449, %v448
    %v522 = vpack.c.b16 %v451, %v450
    %v523 = vpack.c.b16 %v453, %v452
    %v524 = vpack.c.b16 %v455, %v454
    %v525 = vpack.c.b16 %v457, %v456
    %v526 = vpack.c.b16 %v459, %v458
    %v527 = vpack.c.b16 %v461, %v460
    %v528 = vpack.c.b16 %v463, %v462
    %v529 = vpack.c.b16 %v465, %v464
    %594 = vmatprep.subr.bf16.mxu0 0
    %595 = vmatpush1.bf16.msra.mxu0 %v466
    %596 = vmatprep.subr.bf16.mxu0 0
    %597 = vmatpush1.bf16.msra.mxu0 %v467
    %598 = vmatprep.subr.bf16.mxu0 0
    %599 = vmatpush1.bf16.msra.mxu0 %v468
    %600 = vmatprep.subr.bf16.mxu0 0
    %601 = vmatpush1.bf16.msra.mxu0 %v469
    %602 = vmatprep.subr.bf16.mxu0 0
    %603 = vmatpush1.bf16.msra.mxu0 %v470
    %604 = vmatprep.subr.bf16.mxu0 0
    %605 = vmatpush1.bf16.msra.mxu0 %v471
    %606 = vmatprep.subr.bf16.mxu0 0
    %607 = vmatpush1.bf16.msra.mxu0 %v472
    %608 = vmatprep.subr.bf16.mxu0 0
    %609 = vmatpush1.bf16.msra.mxu0 %v473
    %610 = vmatprep.subr.bf16.mxu0 0
    %611 = vmatpush1.bf16.msra.mxu0 %v474
    %612 = vmatprep.subr.bf16.mxu0 0
    %613 = vmatpush1.bf16.msra.mxu0 %v475
    %614 = vmatprep.subr.bf16.mxu0 0
    %615 = vmatpush1.bf16.msra.mxu0 %v476
    %616 = vmatprep.subr.bf16.mxu0 0
    %617 = vmatpush1.bf16.msra.mxu0 %v477
    %618 = vmatprep.subr.bf16.mxu0 0
    %619 = vmatpush1.bf16.msra.mxu0 %v478
    %620 = vmatprep.subr.bf16.mxu0 0
    %621 = vmatpush1.bf16.msra.mxu0 %v479
    %622 = vmatprep.subr.bf16.mxu0 0
    %623 = vmatpush1.bf16.msra.mxu0 %v480
    %624 = vmatprep.subr.bf16.mxu0 0
    %625 = vmatpush1.bf16.msra.mxu0 %v481
    %626 = vmatprep.mubr.bf16.mxu0 %v203
    %627 = vmatmul.mubr.bf16.gmra.mrb[0].mxu0 %v202
    %v628 = vpop.f32.mrb[0].mxu0
    %v629 = vadd.f32 0.0, %v628
    %v630 = vpop.f32.mrb[0].mxu0
    %v631 = vpop.f32.mrb[0].mxu0
    %v632 = vpop.f32.mrb[0].mxu0
    %633 = vdwg.mxu0
    %634 = vmatprep.subr.bf16.mxu0 0
    %635 = vmatpush1.bf16.msra.mxu0 %v482
    %636 = vmatprep.subr.bf16.mxu0 0
    %637 = vmatpush1.bf16.msra.mxu0 %v483
    %638 = vmatprep.subr.bf16.mxu0 0
    %639 = vmatpush1.bf16.msra.mxu0 %v484
    %640 = vmatprep.subr.bf16.mxu0 0
    %641 = vmatpush1.bf16.msra.mxu0 %v485
    %642 = vmatprep.subr.bf16.mxu0 0
    %643 = vmatpush1.bf16.msra.mxu0 %v486
    %644 = vmatprep.subr.bf16.mxu0 0
    %645 = vmatpush1.bf16.msra.mxu0 %v487
    %646 = vmatprep.subr.bf16.mxu0 0
    %647 = vmatpush1.bf16.msra.mxu0 %v488
    %648 = vmatprep.subr.bf16.mxu0 0
    %649 = vmatpush1.bf16.msra.mxu0 %v489
    %650 = vmatprep.subr.bf16.mxu0 0
    %651 = vmatpush1.bf16.msra.mxu0 %v490
    %652 = vmatprep.subr.bf16.mxu0 0
    %653 = vmatpush1.bf16.msra.mxu0 %v491
    %654 = vmatprep.subr.bf16.mxu0 0
    %655 = vmatpush1.bf16.msra.mxu0 %v492
    %656 = vmatprep.subr.bf16.mxu0 0
    %657 = vmatpush1.bf16.msra.mxu0 %v493
    %658 = vmatprep.subr.bf16.mxu0 0
    %659 = vmatpush1.bf16.msra.mxu0 %v494
    %660 = vmatprep.subr.bf16.mxu0 0
    %661 = vmatpush1.bf16.msra.mxu0 %v495
    %662 = vmatprep.subr.bf16.mxu0 0
    %663 = vmatpush1.bf16.msra.mxu0 %v496
    %664 = vmatprep.subr.bf16.mxu0 0
    %665 = vmatpush1.bf16.msra.mxu0 %v497
    %666 = vmatprep.mubr.bf16.mxu0 %v205
    %667 = vmatmul.mubr.bf16.gmra.mrb[0].mxu0 %v204
    %v668 = vpop.f32.mrb[0].mxu0
    %v669 = vadd.f32 %v629, %v668
    %v670 = vpop.f32.mrb[0].mxu0
    %v671 = vpop.f32.mrb[0].mxu0
    %v672 = vpop.f32.mrb[0].mxu0
    %673 = vdwg.mxu0
    %674 = vmatprep.subr.bf16.mxu0 0
    %675 = vmatpush1.bf16.msra.mxu0 %v498
    %676 = vmatprep.subr.bf16.mxu0 0
    %677 = vmatpush1.bf16.msra.mxu0 %v499
    %678 = vmatprep.subr.bf16.mxu0 0
    %679 = vmatpush1.bf16.msra.mxu0 %v500
    %680 = vmatprep.subr.bf16.mxu0 0
    %681 = vmatpush1.bf16.msra.mxu0 %v501
    %682 = vmatprep.subr.bf16.mxu0 0
    %683 = vmatpush1.bf16.msra.mxu0 %v502
    %684 = vmatprep.subr.bf16.mxu0 0
    %685 = vmatpush1.bf16.msra.mxu0 %v503
    %686 = vmatprep.subr.bf16.mxu0 0
    %687 = vmatpush1.bf16.msra.mxu0 %v504
    %688 = vmatprep.subr.bf16.mxu0 0
    %689 = vmatpush1.bf16.msra.mxu0 %v505
    %690 = vmatprep.subr.bf16.mxu0 0
    %691 = vmatpush1.bf16.msra.mxu0 %v506
    %692 = vmatprep.subr.bf16.mxu0 0
    %693 = vmatpush1.bf16.msra.mxu0 %v507
    %694 = vmatprep.subr.bf16.mxu0 0
    %695 = vmatpush1.bf16.msra.mxu0 %v508
    %696 = vmatprep.subr.bf16.mxu0 0
    %697 = vmatpush1.bf16.msra.mxu0 %v509
    %698 = vmatprep.subr.bf16.mxu0 0
    %699 = vmatpush1.bf16.msra.mxu0 %v510
    %700 = vmatprep.subr.bf16.mxu0 0
    %701 = vmatpush1.bf16.msra.mxu0 %v511
    %702 = vmatprep.subr.bf16.mxu0 0
    %703 = vmatpush1.bf16.msra.mxu0 %v512
    %704 = vmatprep.subr.bf16.mxu0 0
    %705 = vmatpush1.bf16.msra.mxu0 %v513
    %706 = vmatprep.mubr.bf16.mxu0 %v207
    %707 = vmatmul.mubr.bf16.gmra.mrb[0].mxu0 %v206
    %v708 = vpop.f32.mrb[0].mxu0
    %v709 = vadd.f32 %v669, %v708
    %v710 = vpop.f32.mrb[0].mxu0
    %v711 = vpop.f32.mrb[0].mxu0
    %v712 = vpop.f32.mrb[0].mxu0
    %713 = vdwg.mxu0
    %714 = vmatprep.subr.bf16.mxu0 0
    %715 = vmatpush1.bf16.msra.mxu0 %v514
    %716 = vmatprep.subr.bf16.mxu0 0
    %717 = vmatpush1.bf16.msra.mxu0 %v515
    %718 = vmatprep.subr.bf16.mxu0 0
    %719 = vmatpush1.bf16.msra.mxu0 %v516
    %720 = vmatprep.subr.bf16.mxu0 0
    %721 = vmatpush1.bf16.msra.mxu0 %v517
    %722 = vmatprep.subr.bf16.mxu0 0
    %723 = vmatpush1.bf16.msra.mxu0 %v518
    %724 = vmatprep.subr.bf16.mxu0 0
    %725 = vmatpush1.bf16.msra.mxu0 %v519
    %726 = vmatprep.subr.bf16.mxu0 0
    %727 = vmatpush1.bf16.msra.mxu0 %v520
    %728 = vmatprep.subr.bf16.mxu0 0
    %729 = vmatpush1.bf16.msra.mxu0 %v521
    %730 = vmatprep.subr.bf16.mxu0 0
    %731 = vmatpush1.bf16.msra.mxu0 %v522
    %732 = vmatprep.subr.bf16.mxu0 0
    %733 = vmatpush1.bf16.msra.mxu0 %v523
    %734 = vmatprep.subr.bf16.mxu0 0
    %735 = vmatpush1.bf16.msra.mxu0 %v524
    %736 = vmatprep.subr.bf16.mxu0 0
    %737 = vmatpush1.bf16.msra.mxu0 %v525
    %738 = vmatprep.subr.bf16.mxu0 0
    %739 = vmatpush1.bf16.msra.mxu0 %v526
    %740 = vmatprep.subr.bf16.mxu0 0
    %741 = vmatpush1.bf16.msra.mxu0 %v527
    %742 = vmatprep.subr.bf16.mxu0 0
    %743 = vmatpush1.bf16.msra.mxu0 %v528
    %744 = vmatprep.subr.bf16.mxu0 0
    %745 = vmatpush1.bf16.msra.mxu0 %v529
    %746 = vmatprep.mubr.bf16.mxu0 %v209
    %747 = vmatmul.mubr.bf16.gmra.mrb[0].mxu0 %v208
    %v748 = vpop.f32.mrb[0].mxu0
    %v749 = vadd.f32 %v709, %v748
    %v750 = vpop.f32.mrb[0].mxu0
    %v751 = vpop.f32.mrb[0].mxu0
    %v752 = vpop.f32.mrb[0].mxu0
    %753 = vdwg.mxu0
    %v754 = vadd.f32 %v193, %v749
    %755 = vst [vmem:[#allocation2] sm:$0xff] %v754
    %v756 = vld [vmem:[#allocation3] sm:$0xff]
    %v757 = vld [vmem:[#allocation7] sm:$0xff]
    %v758 = vld [vmem:[#allocation7 + $0x8] sm:$0xff]
    %v759 = vld [vmem:[#allocation7 + $0x10] sm:$0xff]
    %v760 = vld [vmem:[#allocation7 + $0x18] sm:$0xff]
    %v761 = vld [vmem:[#allocation7 + $0x20] sm:$0xff]
    %v762 = vld [vmem:[#allocation7 + $0x28] sm:$0xff]
    %v763 = vld [vmem:[#allocation7 + $0x30] sm:$0xff]
    %v764 = vld [vmem:[#allocation7 + $0x38] sm:$0xff]
    %v765 = vpack.c.bf16 %v757, %v757
    %v766 = vpack.c.bf16 %v758, %v758
    %v767 = vpack.c.bf16 %v759, %v759
    %v768 = vpack.c.bf16 %v760, %v760
    %v769 = vpack.c.bf16 %v761, %v761
    %v770 = vpack.c.bf16 %v762, %v762
    %v771 = vpack.c.bf16 %v763, %v763
    %v772 = vpack.c.bf16 %v764, %v764
    %773 = vmatprep.subr.bf16.mxu0 0
    %774 = vmatpush1.bf16.msra.mxu0 %v466
    %775 = vmatprep.subr.bf16.mxu0 0
    %776 = vmatpush1.bf16.msra.mxu0 %v467
    %777 = vmatprep.subr.bf16.mxu0 0
    %778 = vmatpush1.bf16.msra.mxu0 %v468
    %779 = vmatprep.subr.bf16.mxu0 0
    %780 = vmatpush1.bf16.msra.mxu0 %v469
    %781 = vmatprep.subr.bf16.mxu0 0
    %782 = vmatpush1.bf16.msra.mxu0 %v470
    %783 = vmatprep.subr.bf16.mxu0 0
    %784 = vmatpush1.bf16.msra.mxu0 %v471
    %785 = vmatprep.subr.bf16.mxu0 0
    %786 = vmatpush1.bf16.msra.mxu0 %v472
    %787 = vmatprep.subr.bf16.mxu0 0
    %788 = vmatpush1.bf16.msra.mxu0 %v473
    %789 = vmatprep.subr.bf16.mxu0 0
    %790 = vmatpush1.bf16.msra.mxu0 %v474
    %791 = vmatprep.subr.bf16.mxu0 0
    %792 = vmatpush1.bf16.msra.mxu0 %v475
    %793 = vmatprep.subr.bf16.mxu0 0
    %794 = vmatpush1.bf16.msra.mxu0 %v476
    %795 = vmatprep.subr.bf16.mxu0 0
    %796 = vmatpush1.bf16.msra.mxu0 %v477
    %797 = vmatprep.subr.bf16.mxu0 0
    %798 = vmatpush1.bf16.msra.mxu0 %v478
    %799 = vmatprep.subr.bf16.mxu0 0
    %800 = vmatpush1.bf16.msra.mxu0 %v479
    %801 = vmatprep.subr.bf16.mxu0 0
    %802 = vmatpush1.bf16.msra.mxu0 %v480
    %803 = vmatprep.subr.bf16.mxu0 0
    %804 = vmatpush1.bf16.msra.mxu0 %v481
    %805 = vmatprep.mubr.bf16.mxu0 %v766
    %806 = vmatmul.mubr.bf16.gmra.mrb[0].mxu0 %v765
    %v807 = vpop.f32.mrb[0].mxu0
    %v808 = vadd.f32 0.0, %v807
    %v809 = vpop.f32.mrb[0].mxu0
    %v810 = vpop.f32.mrb[0].mxu0
    %v811 = vpop.f32.mrb[0].mxu0
    %812 = vdwg.mxu0
    %813 = vmatprep.subr.bf16.mxu0 0
    %814 = vmatpush1.bf16.msra.mxu0 %v482
    %815 = vmatprep.subr.bf16.mxu0 0
    %816 = vmatpush1.bf16.msra.mxu0 %v483
    %817 = vmatprep.subr.bf16.mxu0 0
    %818 = vmatpush1.bf16.msra.mxu0 %v484
    %819 = vmatprep.subr.bf16.mxu0 0
    %820 = vmatpush1.bf16.msra.mxu0 %v485
    %821 = vmatprep.subr.bf16.mxu0 0
    %822 = vmatpush1.bf16.msra.mxu0 %v486
    %823 = vmatprep.subr.bf16.mxu0 0
    %824 = vmatpush1.bf16.msra.mxu0 %v487
    %825 = vmatprep.subr.bf16.mxu0 0
    %826 = vmatpush1.bf16.msra.mxu0 %v488
    %827 = vmatprep.subr.bf16.mxu0 0
    %828 = vmatpush1.bf16.msra.mxu0 %v489
    %829 = vmatprep.subr.bf16.mxu0 0
    %830 = vmatpush1.bf16.msra.mxu0 %v490
    %831 = vmatprep.subr.bf16.mxu0 0
    %832 = vmatpush1.bf16.msra.mxu0 %v491
    %833 = vmatprep.subr.bf16.mxu0 0
    %834 = vmatpush1.bf16.msra.mxu0 %v492
    %835 = vmatprep.subr.bf16.mxu0 0
    %836 = vmatpush1.bf16.msra.mxu0 %v493
    %837 = vmatprep.subr.bf16.mxu0 0
    %838 = vmatpush1.bf16.msra.mxu0 %v494
    %839 = vmatprep.subr.bf16.mxu0 0
    %840 = vmatpush1.bf16.msra.mxu0 %v495
    %841 = vmatprep.subr.bf16.mxu0 0
    %842 = vmatpush1.bf16.msra.mxu0 %v496
    %843 = vmatprep.subr.bf16.mxu0 0
    %844 = vmatpush1.bf16.msra.mxu0 %v497
    %845 = vmatprep.mubr.bf16.mxu0 %v768
    %846 = vmatmul.mubr.bf16.gmra.mrb[0].mxu0 %v767
    %v847 = vpop.f32.mrb[0].mxu0
    %v848 = vadd.f32 %v808, %v847
    %v849 = vpop.f32.mrb[0].mxu0
    %v850 = vpop.f32.mrb[0].mxu0
    %v851 = vpop.f32.mrb[0].mxu0
    %852 = vdwg.mxu0
    %853 = vmatprep.subr.bf16.mxu0 0
    %854 = vmatpush1.bf16.msra.mxu0 %v498
    %855 = vmatprep.subr.bf16.mxu0 0
    %856 = vmatpush1.bf16.msra.mxu0 %v499
    %857 = vmatprep.subr.bf16.mxu0 0
    %858 = vmatpush1.bf16.msra.mxu0 %v500
    %859 = vmatprep.subr.bf16.mxu0 0
    %860 = vmatpush1.bf16.msra.mxu0 %v501
    %861 = vmatprep.subr.bf16.mxu0 0
    %862 = vmatpush1.bf16.msra.mxu0 %v502
    %863 = vmatprep.subr.bf16.mxu0 0
    %864 = vmatpush1.bf16.msra.mxu0 %v503
    %865 = vmatprep.subr.bf16.mxu0 0
    %866 = vmatpush1.bf16.msra.mxu0 %v504
    %867 = vmatprep.subr.bf16.mxu0 0
    %868 = vmatpush1.bf16.msra.mxu0 %v505
    %869 = vmatprep.subr.bf16.mxu0 0
    %870 = vmatpush1.bf16.msra.mxu0 %v506
    %871 = vmatprep.subr.bf16.mxu0 0
    %872 = vmatpush1.bf16.msra.mxu0 %v507
    %873 = vmatprep.subr.bf16.mxu0 0
    %874 = vmatpush1.bf16.msra.mxu0 %v508
    %875 = vmatprep.subr.bf16.mxu0 0
    %876 = vmatpush1.bf16.msra.mxu0 %v509
    %877 = vmatprep.subr.bf16.mxu0 0
    %878 = vmatpush1.bf16.msra.mxu0 %v510
    %879 = vmatprep.subr.bf16.mxu0 0
    %880 = vmatpush1.bf16.msra.mxu0 %v511
    %881 = vmatprep.subr.bf16.mxu0 0
    %882 = vmatpush1.bf16.msra.mxu0 %v512
    %883 = vmatprep.subr.bf16.mxu0 0
    %884 = vmatpush1.bf16.msra.mxu0 %v513
    %885 = vmatprep.mubr.bf16.mxu0 %v770
    %886 = vmatmul.mubr.bf16.gmra.mrb[0].mxu0 %v769
    %v887 = vpop.f32.mrb[0].mxu0
    %v888 = vadd.f32 %v848, %v887
    %v889 = vpop.f32.mrb[0].mxu0
    %v890 = vpop.f32.mrb[0].mxu0
    %v891 = vpop.f32.mrb[0].mxu0
    %892 = vdwg.mxu0
    %893 = vmatprep.subr.bf16.mxu0 0
    %894 = vmatpush1.bf16.msra.mxu0 %v514
    %895 = vmatprep.subr.bf16.mxu0 0
    %896 = vmatpush1.bf16.msra.mxu0 %v515
    %897 = vmatprep.subr.bf16.mxu0 0
    %898 = vmatpush1.bf16.msra.mxu0 %v516
    %899 = vmatprep.subr.bf16.mxu0 0
    %900 = vmatpush1.bf16.msra.mxu0 %v517
    %901 = vmatprep.subr.bf16.mxu0 0
    %902 = vmatpush1.bf16.msra.mxu0 %v518
    %903 = vmatprep.subr.bf16.mxu0 0
    %904 = vmatpush1.bf16.msra.mxu0 %v519
    %905 = vmatprep.subr.bf16.mxu0 0
    %906 = vmatpush1.bf16.msra.mxu0 %v520
    %907 = vmatprep.subr.bf16.mxu0 0
    %908 = vmatpush1.bf16.msra.mxu0 %v521
    %909 = vmatprep.subr.bf16.mxu0 0
    %910 = vmatpush1.bf16.msra.mxu0 %v522
    %911 = vmatprep.subr.bf16.mxu0 0
    %912 = vmatpush1.bf16.msra.mxu0 %v523
    %913 = vmatprep.subr.bf16.mxu0 0
    %914 = vmatpush1.bf16.msra.mxu0 %v524
    %915 = vmatprep.subr.bf16.mxu0 0
    %916 = vmatpush1.bf16.msra.mxu0 %v525
    %917 = vmatprep.subr.bf16.mxu0 0
    %918 = vmatpush1.bf16.msra.mxu0 %v526
    %919 = vmatprep.subr.bf16.mxu0 0
    %920 = vmatpush1.bf16.msra.mxu0 %v527
    %921 = vmatprep.subr.bf16.mxu0 0
    %922 = vmatpush1.bf16.msra.mxu0 %v528
    %923 = vmatprep.subr.bf16.mxu0 0
    %924 = vmatpush1.bf16.msra.mxu0 %v529
    %925 = vmatprep.mubr.bf16.mxu0 %v772
    %926 = vmatmul.mubr.bf16.gmra.mrb[0].mxu0 %v771
    %v927 = vpop.f32.mrb[0].mxu0
    %v928 = vadd.f32 %v888, %v927
    %v929 = vpop.f32.mrb[0].mxu0
    %v930 = vpop.f32.mrb[0].mxu0
    %v931 = vpop.f32.mrb[0].mxu0
    %932 = vdwg.mxu0
    %v933 = vadd.f32 %v756, %v928
    %934 = vst [vmem:[#allocation3] sm:$0xff] %v933
    // Predicated region
    $region34: #{tpu_custom_call.1} parent=1 // pred_check
      %p935 = pneg %p59
    $region35: #{tpu_custom_call.1} parent=1 // pred_check_branch
      %937 = sbr.rel (%p935) target = $region37
    $region36: #{tpu_custom_call.1} parent=1 // pred_region
      %v938 = vld [vmem:[%s3] sm:$0x1]
      %v939 = vld [vmem:[#allocation2] sm:$0xff]
      %v941 = vlaneseq
      %v942 = vshrl.u32 %v941, 7
      %v943 = vsub.s32 0, %v942
      %v944 = vrot.slane %v938, %v943
      %v946 = vadd.f32 %v939, %v944
      %v947 = vpack.c.bf16 %v946, %v946
      %948 = vst [vmem:[#allocation10] sm:$0xf] %v947
      %v949 = vld [vmem:[#allocation3] sm:$0xff]
      %v950 = vadd.f32 %v949, %v944
      %v951 = vpack.c.bf16 %v950, %v950
      %952 = vst [vmem:[#allocation11] sm:$0xf] %v951
    $region37: #{tpu_custom_call.1} parent=1 // pred_fallthru
      _
    // Predicated region
    $region38: #{tpu_custom_call.1} parent=1 // pred_check
      _
    $region39: #{tpu_custom_call.1} parent=1 // pred_check_branch
      %954 = sbr.rel (0) target = $region41
    $region40: #{tpu_custom_call.1} parent=1 // pred_region
      %s956 = ssub.s32 64, 64
      %957 = vsyncadd [#allocation6], %s956
      %s959 = sshll.u32 [#allocation10], 4
      %s960 = int_to_ptr.vmem [resolvable:$true] %s959
      %962 = dma.vmem_to_hbm [thread:$0]  %s960, 64, %s4, [#allocation6]
    $region41: #{tpu_custom_call.1} parent=1 // pred_fallthru
      _
    // Predicated region
    $region42: #{tpu_custom_call.1} parent=1 // pred_check
      _
    $region43: #{tpu_custom_call.1} parent=1 // pred_check_branch
      %964 = sbr.rel (0) target = $region45
    $region44: #{tpu_custom_call.1} parent=1 // pred_region
      %s966 = ssub.s32 64, 64
      %967 = vsyncadd [#allocation12], %s966
      %s969 = sshll.u32 [#allocation11], 4
      %s970 = int_to_ptr.vmem [resolvable:$true] %s969
      %972 = dma.vmem_to_hbm [thread:$0]  %s970, 64, %s5, [#allocation12]
    $region45: #{tpu_custom_call.1} parent=1 // pred_fallthru
      _
    // Predicated region
    $region46: #{tpu_custom_call.1} parent=1 // pred_check
      _
    $region47: #{tpu_custom_call.1} parent=1 // pred_check_branch
      %974 = sbr.rel (0) target = $region49
    $region48: #{tpu_custom_call.1} parent=1 // pred_region
      %975 = dma.done [#allocation6], 64
    $region49: #{tpu_custom_call.1} parent=1 // pred_fallthru
      _
    // Predicated region
    $region50: #{tpu_custom_call.1} parent=1 // pred_check
      _
    $region51: #{tpu_custom_call.1} parent=1 // pred_check_branch
      %977 = sbr.rel (0) target = $region53
    $region52: #{tpu_custom_call.1} parent=1 // pred_region
      %978 = dma.done [#allocation12], 64
    $region53: #{tpu_custom_call.1} parent=1 // pred_fallthru
      _
    %979 = vsyncpa [#allocation5], 1
    %980 = vsyncpa [#allocation8], 1
    %981 = vsyncpa [#allocation6], 1
    %982 = vsyncpa [#allocation12], 1

// kernel: tpu_custom_call.1
$region0: #{tpu_custom_call.1}
  #allocation0 [shape = 'u32[]', space=smem, size = 0x4, offset = 0x4, fixed_abs, tag = 'smem constant byte address 0x4 - core index']
  #allocation1 [shape = 'u32[144,128]{1,0:T(1,128)}', space=vmem, size = 0x12000, scoped, tag = 'internal scratch']
  #allocation2 [shape = 'f32[8,128]{1,0:T(8,128)}', space=vmem, size = 0x1000, scoped, tag = 'scratch operand']
  #allocation3 [shape = 'f32[8,128]{1,0:T(8,128)}', space=vmem, size = 0x1000, scoped, tag = 'scratch operand']
  %s0 = inlined_call_operand.hbm [shape: f32[8,1024], index: 0, kind: input, shape index: {}]
  %s1 = inlined_call_operand.hbm [shape: f32[8,1024], index: 1, kind: input, shape index: {}]
  %s2 = inlined_call_operand.hbm [shape: bf16[1024,128], index: 2, kind: input, shape index: {}]
  %s3 = inlined_call_operand.vmem [shape: f32[1,128], index: 3, kind: input, shape index: {}]
  %s4 = inlined_call_operand.hbm [shape: bf16[8,128], index: 4, kind: output, shape index: {0}]
  %s5 = inlined_call_operand.hbm [shape: bf16[8,128], index: 5, kind: output, shape index: {1}]
  %6 = xla_tuple %s4, %s5
  %s7 = sld [smem:[#allocation0]]
  $region54: #{tpu_custom_call.1} parent=0
    _
  %s9 = ssub.s32 1, %s7
  %s10 = scalar_select 0, %s9, %s7
  $region1: #{tpu_custom_call.1} parent=0
    #allocation4 [shape = 'u8[32768]{0}', space=vmem, size = 0x8000, scoped, tag = 'input window, operand 0, single buffered']
    #allocation5 [shape = 's32[1]{0}', space=sflag, size = 0x4, scoped, tag = 'scoped memory for tpu_custom_call.1']
    #allocation6 [shape = 's32[1]{0}', space=sflag, size = 0x4, scoped, tag = 'scoped memory for tpu_custom_call.1']
    #allocation7 [shape = 'u8[32768]{0}', space=vmem, size = 0x8000, scoped, tag = 'input window, operand 1, single buffered']
    #allocation8 [shape = 's32[1]{0}', space=sflag, size = 0x4, scoped, tag = 'scoped memory for tpu_custom_call.1']
    #allocation9 [shape = 'u8[262144]{0}', space=vmem, size = 0x40000, scoped, tag = 'input window, operand 2, single buffered']
    #allocation10 [shape = 'u8[2048]{0}', space=vmem, size = 0x800, scoped, tag = 'output window, operand 0, single buffered']
    #allocation11 [shape = 'u8[2048]{0}', space=vmem, size = 0x800, scoped, tag = 'output window, operand 1, single buffered']
    #allocation12 [shape = 's32[1]{0}', space=sflag, size = 0x4, scoped, tag = 'scoped memory for tpu_custom_call.1']
    %11 = vsyncpa [#allocation5], 0
    %12 = vsyncpa [#allocation8], 0
    %13 = vsyncpa [#allocation6], 0
    %14 = vsyncpa [#allocation12], 0
    // Predicated region
    $region2: #{tpu_custom_call.1} parent=1 // pred_check
      _
    $region3: #{tpu_custom_call.1} parent=1 // pred_check_branch
      %16 = sbr.rel (0) target = $region5
    $region4: #{tpu_custom_call.1} parent=1 // pred_region
      %s18 = ssub.s32 1024, 1024
      %19 = vsyncadd [#allocation5], %s18
      %s21 = sshll.u32 [#allocation4], 4
      %s22 = int_to_ptr.vmem [resolvable:$true] %s21
      %24 = dma.hbm_to_vmem [thread:$0]  %s0, 1024, %s22, [#allocation5]
    $region5: #{tpu_custom_call.1} parent=1 // pred_fallthru
      _
    // Predicated region
    $region6: #{tpu_custom_call.1} parent=1 // pred_check
      _
    $region7: #{tpu_custom_call.1} parent=1 // pred_check_branch
      %26 = sbr.rel (0) target = $region9
    $region8: #{tpu_custom_call.1} parent=1 // pred_region
      %s28 = ssub.s32 1024, 1024
      %29 = vsyncadd [#allocation8], %s28
      %s31 = sshll.u32 [#allocation7], 4
      %s32 = int_to_ptr.vmem [resolvable:$true] %s31
      %34 = dma.hbm_to_vmem [thread:$0]  %s1, 1024, %s32, [#allocation8]
    $region9: #{tpu_custom_call.1} parent=1 // pred_fallthru
      _
    // Predicated region
    $region10: #{tpu_custom_call.1} parent=1 // pred_check
      _
    $region11: #{tpu_custom_call.1} parent=1 // pred_check_branch
      %36 = sbr.rel (0) target = $region13
    $region12: #{tpu_custom_call.1} parent=1 // pred_region
      %s38 = ssub.s32 8192, 8192
      %39 = vsyncadd [#allocation8], %s38
      %s40 = sshll.u32 [#allocation9], 4
      %s41 = int_to_ptr.vmem [resolvable:$true] %s40
      %46 = dma.hbm_to_vmem [thread:$0]  %s2, 8192, %s41, [#allocation8], 64, 64, 4
    $region13: #{tpu_custom_call.1} parent=1 // pred_fallthru
      _
    // Predicated region
    $region14: #{tpu_custom_call.1} parent=1 // pred_check
      _
    $region15: #{tpu_custom_call.1} parent=1 // pred_check_branch
      %48 = sbr.rel (0) target = $region17
    $region16: #{tpu_custom_call.1} parent=1 // pred_region
      _
    $region17: #{tpu_custom_call.1} parent=1 // pred_fallthru
      _
    // Predicated region
    $region18: #{tpu_custom_call.1} parent=1 // pred_check
      _
    $region19: #{tpu_custom_call.1} parent=1 // pred_check_branch
      %50 = sbr.rel (0) target = $region21
    $region20: #{tpu_custom_call.1} parent=1 // pred_region
      %51 = dma.done [#allocation5], 1024
    $region21: #{tpu_custom_call.1} parent=1 // pred_fallthru
      _
    // Predicated region
    $region22: #{tpu_custom_call.1} parent=1 // pred_check
      _
    $region23: #{tpu_custom_call.1} parent=1 // pred_check_branch
      %53 = sbr.rel (0) target = $region25
    $region24: #{tpu_custom_call.1} parent=1 // pred_region
      %54 = dma.done [#allocation8], 1024
    $region25: #{tpu_custom_call.1} parent=1 // pred_fallthru
      _
    // Predicated region
    $region26: #{tpu_custom_call.1} parent=1 // pred_check
      _
    $region27: #{tpu_custom_call.1} parent=1 // pred_check_branch
      %56 = sbr.rel (0) target = $region29
    $region28: #{tpu_custom_call.1} parent=1 // pred_region
      %57 = dma.done [#allocation8], 8192
    $region29: #{tpu_custom_call.1} parent=1 // pred_fallthru
      _
    %p59 = scmp.eq.s32.totalorder 0, 0
    // Predicated region
    $region30: #{tpu_custom_call.1} parent=1 // pred_check
      %p60 = pneg %p59
    $region31: #{tpu_custom_call.1} parent=1 // pred_check_branch
      %62 = sbr.rel (%p60) target = $region33
    $region32: #{tpu_custom_call.1} parent=1 // pred_region
      %63 = vst [vmem:[#allocation2] sm:$0xff] 0.0
      %64 = vst [vmem:[#allocation3] sm:$0xff] 0.0
    $region33: #{tpu_custom_call.1} parent=1 // pred_fallthru
      _
    %v65 = vld [vmem:[#allocation9] sm:$0xf]
    %v66 = vld [vmem:[#allocation9 + $0x4] sm:$0xf]
    %v67 = vld [vmem:[#allocation9 + $0x8] sm:$0xf]
    %v68 = vld [vmem:[#allocation9 + $0xc] sm:$0xf]
    %v69 = vld [vmem:[#allocation9 + $0x10] sm:$0xf]
    %v70 = vld [vmem:[#allocation9 + $0x14] sm:$0xf]
    %v71 = vld [vmem:[#allocation9 + $0x18] sm:$0xf]
    %v72 = vld [vmem:[#allocation9 + $0x1c] sm:$0xf]
    %v73 = vld [vmem:[#allocation9 + $0x20] sm:$0xf]
    %v74 = vld [vmem:[#allocation9 + $0x24] sm:$0xf]
    %v75 = vld [vmem:[#allocation9 + $0x28] sm:$0xf]
    %v76 = vld [vmem:[#allocation9 + $0x2c] sm:$0xf]
    %v77 = vld [vmem:[#allocation9 + $0x30] sm:$0xf]
    %v78 = vld [vmem:[#allocation9 + $0x34] sm:$0xf]
    %v79 = vld [vmem:[#allocation9 + $0x38] sm:$0xf]
    %v80 = vld [vmem:[#allocation9 + $0x3c] sm:$0xf]
    %v81 = vld [vmem:[#allocation9 + $0x40] sm:$0xf]
    %v82 = vld [vmem:[#allocation9 + $0x44] sm:$0xf]
    %v83 = vld [vmem:[#allocation9 + $0x48] sm:$0xf]
    %v84 = vld [vmem:[#allocation9 + $0x4c] sm:$0xf]
    %v85 = vld [vmem:[#allocation9 + $0x50] sm:$0xf]
    %v86 = vld [vmem:[#allocation9 + $0x54] sm:$0xf]
    %v87 = vld [vmem:[#allocation9 + $0x58] sm:$0xf]
    %v88 = vld [vmem:[#allocation9 + $0x5c] sm:$0xf]
    %v89 = vld [vmem:[#allocation9 + $0x60] sm:$0xf]
    %v90 = vld [vmem:[#allocation9 + $0x64] sm:$0xf]
    %v91 = vld [vmem:[#allocation9 + $0x68] sm:$0xf]
    %v92 = vld [vmem:[#allocation9 + $0x6c] sm:$0xf]
    %v93 = vld [vmem:[#allocation9 + $0x70] sm:$0xf]
    %v94 = vld [vmem:[#allocation9 + $0x74] sm:$0xf]
    %v95 = vld [vmem:[#allocation9 + $0x78] sm:$0xf]
    %v96 = vld [vmem:[#allocation9 + $0x7c] sm:$0xf]
    %v97 = vld [vmem:[#allocation9 + $0x80] sm:$0xf]
    %v98 = vld [vmem:[#allocation9 + $0x84] sm:$0xf]
    %v99 = vld [vmem:[#allocation9 + $0x88] sm:$0xf]
    %v100 = vld [vmem:[#allocation9 + $0x8c] sm:$0xf]
    %v101 = vld [vmem:[#allocation9 + $0x90] sm:$0xf]
    %v102 = vld [vmem:[#allocation9 + $0x94] sm:$0xf]
    %v103 = vld [vmem:[#allocation9 + $0x98] sm:$0xf]
    %v104 = vld [vmem:[#allocation9 + $0x9c] sm:$0xf]
    %v105 = vld [vmem:[#allocation9 + $0xa0] sm:$0xf]
    %v106 = vld [vmem:[#allocation9 + $0xa4] sm:$0xf]
    %v107 = vld [vmem:[#allocation9 + $0xa8] sm:$0xf]
    %v108 = vld [vmem:[#allocation9 + $0xac] sm:$0xf]
    %v109 = vld [vmem:[#allocation9 + $0xb0] sm:$0xf]
    %v110 = vld [vmem:[#allocation9 + $0xb4] sm:$0xf]
    %v111 = vld [vmem:[#allocation9 + $0xb8] sm:$0xf]
    %v112 = vld [vmem:[#allocation9 + $0xbc] sm:$0xf]
    %v113 = vld [vmem:[#allocation9 + $0xc0] sm:$0xf]
    %v114 = vld [vmem:[#allocation9 + $0xc4] sm:$0xf]
    %v115 = vld [vmem:[#allocation9 + $0xc8] sm:$0xf]
    %v116 = vld [vmem:[#allocation9 + $0xcc] sm:$0xf]
    %v117 = vld [vmem:[#allocation9 + $0xd0] sm:$0xf]
    %v118 = vld [vmem:[#allocation9 + $0xd4] sm:$0xf]
    %v119 = vld [vmem:[#allocation9 + $0xd8] sm:$0xf]
    %v120 = vld [vmem:[#allocation9 + $0xdc] sm:$0xf]
    %v121 = vld [vmem:[#allocation9 + $0xe0] sm:$0xf]
    %v122 = vld [vmem:[#allocation9 + $0xe4] sm:$0xf]
    %v123 = vld [vmem:[#allocation9 + $0xe8] sm:$0xf]
    %v124 = vld [vmem:[#allocation9 + $0xec] sm:$0xf]
    %v125 = vld [vmem:[#allocation9 + $0xf0] sm:$0xf]
    %v126 = vld [vmem:[#allocation9 + $0xf4] sm:$0xf]
    %v127 = vld [vmem:[#allocation9 + $0xf8] sm:$0xf]
    %v128 = vld [vmem:[#allocation9 + $0xfc] sm:$0xf]
    %v129 = vld [vmem:[#allocation9 + $0x100] sm:$0xf]
    %v130 = vld [vmem:[#allocation9 + $0x104] sm:$0xf]
    %v131 = vld [vmem:[#allocation9 + $0x108] sm:$0xf]
    %v132 = vld [vmem:[#allocation9 + $0x10c] sm:$0xf]
    %v133 = vld [vmem:[#allocation9 + $0x110] sm:$0xf]
    %v134 = vld [vmem:[#allocation9 + $0x114] sm:$0xf]
    %v135 = vld [vmem:[#allocation9 + $0x118] sm:$0xf]
    %v136 = vld [vmem:[#allocation9 + $0x11c] sm:$0xf]
    %v137 = vld [vmem:[#allocation9 + $0x120] sm:$0xf]
    %v138 = vld [vmem:[#allocation9 + $0x124] sm:$0xf]
    %v139 = vld [vmem:[#allocation9 + $0x128] sm:$0xf]
    %v140 = vld [vmem:[#allocation9 + $0x12c] sm:$0xf]
    %v141 = vld [vmem:[#allocation9 + $0x130] sm:$0xf]
    %v142 = vld [vmem:[#allocation9 + $0x134] sm:$0xf]
    %v143 = vld [vmem:[#allocation9 + $0x138] sm:$0xf]
    %v144 = vld [vmem:[#allocation9 + $0x13c] sm:$0xf]
    %v145 = vld [vmem:[#allocation9 + $0x140] sm:$0xf]
    %v146 = vld [vmem:[#allocation9 + $0x144] sm:$0xf]
    %v147 = vld [vmem:[#allocation9 + $0x148] sm:$0xf]
    %v148 = vld [vmem:[#allocation9 + $0x14c] sm:$0xf]
    %v149 = vld [vmem:[#allocation9 + $0x150] sm:$0xf]
    %v150 = vld [vmem:[#allocation9 + $0x154] sm:$0xf]
    %v151 = vld [vmem:[#allocation9 + $0x158] sm:$0xf]
    %v152 = vld [vmem:[#allocation9 + $0x15c] sm:$0xf]
    %v153 = vld [vmem:[#allocation9 + $0x160] sm:$0xf]
    %v154 = vld [vmem:[#allocation9 + $0x164] sm:$0xf]
    %v155 = vld [vmem:[#allocation9 + $0x168] sm:$0xf]
    %v156 = vld [vmem:[#allocation9 + $0x16c] sm:$0xf]
    %v157 = vld [vmem:[#allocation9 + $0x170] sm:$0xf]
    %v158 = vld [vmem:[#allocation9 + $0x174] sm:$0xf]
    %v159 = vld [vmem:[#allocation9 + $0x178] sm:$0xf]
    %v160 = vld [vmem:[#allocation9 + $0x17c] sm:$0xf]
    %v161 = vld [vmem:[#allocation9 + $0x180] sm:$0xf]
    %v162 = vld [vmem:[#allocation9 + $0x184] sm:$0xf]
    %v163 = vld [vmem:[#allocation9 + $0x188] sm:$0xf]
    %v164 = vld [vmem:[#allocation9 + $0x18c] sm:$0xf]
    %v165 = vld [vmem:[#allocation9 + $0x190] sm:$0xf]
    %v166 = vld [vmem:[#allocation9 + $0x194] sm:$0xf]
    %v167 = vld [vmem:[#allocation9 + $0x198] sm:$0xf]
    %v168 = vld [vmem:[#allocation9 + $0x19c] sm:$0xf]
    %v169 = vld [vmem:[#allocation9 + $0x1a0] sm:$0xf]
    %v170 = vld [vmem:[#allocation9 + $0x1a4] sm:$0xf]
    %v171 = vld [vmem:[#allocation9 + $0x1a8] sm:$0xf]
    %v172 = vld [vmem:[#allocation9 + $0x1ac] sm:$0xf]
    %v173 = vld [vmem:[#allocation9 + $0x1b0] sm:$0xf]
    %v174 = vld [vmem:[#allocation9 + $0x1b4] sm:$0xf]
    %v175 = vld [vmem:[#allocation9 + $0x1b8] sm:$0xf]
    %v176 = vld [vmem:[#allocation9 + $0x1bc] sm:$0xf]
    %v177 = vld [vmem:[#allocation9 + $0x1c0] sm:$0xf]
    %v178 = vld [vmem:[#allocation9 + $0x1c4] sm:$0xf]
    %v179 = vld [vmem:[#allocation9 + $0x1c8] sm:$0xf]
    %v180 = vld [vmem:[#allocation9 + $0x1cc] sm:$0xf]
    %v181 = vld [vmem:[#allocation9 + $0x1d0] sm:$0xf]
    %v182 = vld [vmem:[#allocation9 + $0x1d4] sm:$0xf]
    %v183 = vld [vmem:[#allocation9 + $0x1d8] sm:$0xf]
    %v184 = vld [vmem:[#allocation9 + $0x1dc] sm:$0xf]
    %v185 = vld [vmem:[#allocation9 + $0x1e0] sm:$0xf]
    %v186 = vld [vmem:[#allocation9 + $0x1e4] sm:$0xf]
    %v187 = vld [vmem:[#allocation9 + $0x1e8] sm:$0xf]
    %v188 = vld [vmem:[#allocation9 + $0x1ec] sm:$0xf]
    %v189 = vld [vmem:[#allocation9 + $0x1f0] sm:$0xf]
    %v190 = vld [vmem:[#allocation9 + $0x1f4] sm:$0xf]
    %v191 = vld [vmem:[#allocation9 + $0x1f8] sm:$0xf]
    %v192 = vld [vmem:[#allocation9 + $0x1fc] sm:$0xf]
    %v193 = vld [vmem:[#allocation2] sm:$0xff]
    %v194 = vld [vmem:[#allocation4] sm:$0xff]
    %v195 = vld [vmem:[#allocation4 + $0x8] sm:$0xff]
    %v196 = vld [vmem:[#allocation4 + $0x10] sm:$0xff]
    %v197 = vld [vmem:[#allocation4 + $0x18] sm:$0xff]
    %v198 = vld [vmem:[#allocation4 + $0x20] sm:$0xff]
    %v199 = vld [vmem:[#allocation4 + $0x28] sm:$0xff]
    %v200 = vld [vmem:[#allocation4 + $0x30] sm:$0xff]
    %v201 = vld [vmem:[#allocation4 + $0x38] sm:$0xff]
    %v202 = vpack.c.bf16 %v194, %v194
    %v203 = vpack.c.bf16 %v195, %v195
    %v204 = vpack.c.bf16 %v196, %v196
    %v205 = vpack.c.bf16 %v197, %v197
    %v206 = vpack.c.bf16 %v198, %v198
    %v207 = vpack.c.bf16 %v199, %v199
    %v208 = vpack.c.bf16 %v200, %v200
    %v209 = vpack.c.bf16 %v201, %v201
    %v338 = vunpack.c.l.b16 %v65
    %v339 = vunpack.c.l.b16 %v66
    %v340 = vunpack.c.l.b16 %v67
    %v341 = vunpack.c.l.b16 %v68
    %v342 = vunpack.c.l.b16 %v69
    %v343 = vunpack.c.l.b16 %v70
    %v344 = vunpack.c.l.b16 %v71
    %v345 = vunpack.c.l.b16 %v72
    %v346 = vunpack.c.l.b16 %v73
    %v347 = vunpack.c.l.b16 %v74
    %v348 = vunpack.c.l.b16 %v75
    %v349 = vunpack.c.l.b16 %v76
    %v350 = vunpack.c.l.b16 %v77
    %v351 = vunpack.c.l.b16 %v78
    %v352 = vunpack.c.l.b16 %v79
    %v353 = vunpack.c.l.b16 %v80
    %v354 = vunpack.c.l.b16 %v81
    %v355 = vunpack.c.l.b16 %v82
    %v356 = vunpack.c.l.b16 %v83
    %v357 = vunpack.c.l.b16 %v84
    %v358 = vunpack.c.l.b16 %v85
    %v359 = vunpack.c.l.b16 %v86
    %v360 = vunpack.c.l.b16 %v87
    %v361 = vunpack.c.l.b16 %v88
    %v362 = vunpack.c.l.b16 %v89
    %v363 = vunpack.c.l.b16 %v90
    %v364 = vunpack.c.l.b16 %v91
    %v365 = vunpack.c.l.b16 %v92
    %v366 = vunpack.c.l.b16 %v93
    %v367 = vunpack.c.l.b16 %v94
    %v368 = vunpack.c.l.b16 %v95
    %v369 = vunpack.c.l.b16 %v96
    %v370 = vunpack.c.l.b16 %v97
    %v371 = vunpack.c.l.b16 %v98
    %v372 = vunpack.c.l.b16 %v99
    %v373 = vunpack.c.l.b16 %v100
    %v374 = vunpack.c.l.b16 %v101
    %v375 = vunpack.c.l.b16 %v102
    %v376 = vunpack.c.l.b16 %v103
    %v377 = vunpack.c.l.b16 %v104
    %v378 = vunpack.c.l.b16 %v105
    %v379 = vunpack.c.l.b16 %v106
    %v380 = vunpack.c.l.b16 %v107
    %v381 = vunpack.c.l.b16 %v108
    %v382 = vunpack.c.l.b16 %v109
    %v383 = vunpack.c.l.b16 %v110
    %v384 = vunpack.c.l.b16 %v111
    %v385 = vunpack.c.l.b16 %v112
    %v386 = vunpack.c.l.b16 %v113
    %v387 = vunpack.c.l.b16 %v114
    %v388 = vunpack.c.l.b16 %v115
    %v389 = vunpack.c.l.b16 %v116
    %v390 = vunpack.c.l.b16 %v117
    %v391 = vunpack.c.l.b16 %v118
    %v392 = vunpack.c.l.b16 %v119
    %v393 = vunpack.c.l.b16 %v120
    %v394 = vunpack.c.l.b16 %v121
    %v395 = vunpack.c.l.b16 %v122
    %v396 = vunpack.c.l.b16 %v123
    %v397 = vunpack.c.l.b16 %v124
    %v398 = vunpack.c.l.b16 %v125
    %v399 = vunpack.c.l.b16 %v126
    %v400 = vunpack.c.l.b16 %v127
    %v401 = vunpack.c.l.b16 %v128
    %v402 = vunpack.c.l.b16 %v129
    %v403 = vunpack.c.l.b16 %v130
    %v404 = vunpack.c.l.b16 %v131
    %v405 = vunpack.c.l.b16 %v132
    %v406 = vunpack.c.l.b16 %v133
    %v407 = vunpack.c.l.b16 %v134
    %v408 = vunpack.c.l.b16 %v135
    %v409 = vunpack.c.l.b16 %v136
    %v410 = vunpack.c.l.b16 %v137
    %v411 = vunpack.c.l.b16 %v138
    %v412 = vunpack.c.l.b16 %v139
    %v413 = vunpack.c.l.b16 %v140
    %v414 = vunpack.c.l.b16 %v141
    %v415 = vunpack.c.l.b16 %v142
    %v416 = vunpack.c.l.b16 %v143
    %v417 = vunpack.c.l.b16 %v144
    %v418 = vunpack.c.l.b16 %v145
    %v419 = vunpack.c.l.b16 %v146
    %v420 = vunpack.c.l.b16 %v147
    %v421 = vunpack.c.l.b16 %v148
    %v422 = vunpack.c.l.b16 %v149
    %v423 = vunpack.c.l.b16 %v150
    %v424 = vunpack.c.l.b16 %v151
    %v425 = vunpack.c.l.b16 %v152
    %v426 = vunpack.c.l.b16 %v153
    %v427 = vunpack.c.l.b16 %v154
    %v428 = vunpack.c.l.b16 %v155
    %v429 = vunpack.c.l.b16 %v156
    %v430 = vunpack.c.l.b16 %v157
    %v431 = vunpack.c.l.b16 %v158
    %v432 = vunpack.c.l.b16 %v159
    %v433 = vunpack.c.l.b16 %v160
    %v434 = vunpack.c.l.b16 %v161
    %v435 = vunpack.c.l.b16 %v162
    %v436 = vunpack.c.l.b16 %v163
    %v437 = vunpack.c.l.b16 %v164
    %v438 = vunpack.c.l.b16 %v165
    %v439 = vunpack.c.l.b16 %v166
    %v440 = vunpack.c.l.b16 %v167
    %v441 = vunpack.c.l.b16 %v168
    %v442 = vunpack.c.l.b16 %v169
    %v443 = vunpack.c.l.b16 %v170
    %v444 = vunpack.c.l.b16 %v171
    %v445 = vunpack.c.l.b16 %v172
    %v446 = vunpack.c.l.b16 %v173
    %v447 = vunpack.c.l.b16 %v174
    %v448 = vunpack.c.l.b16 %v175
    %v449 = vunpack.c.l.b16 %v176
    %v450 = vunpack.c.l.b16 %v177
    %v451 = vunpack.c.l.b16 %v178
    %v452 = vunpack.c.l.b16 %v179
    %v453 = vunpack.c.l.b16 %v180
    %v454 = vunpack.c.l.b16 %v181
    %v455 = vunpack.c.l.b16 %v182
    %v456 = vunpack.c.l.b16 %v183
    %v457 = vunpack.c.l.b16 %v184
    %v458 = vunpack.c.l.b16 %v185
    %v459 = vunpack.c.l.b16 %v186
    %v460 = vunpack.c.l.b16 %v187
    %v461 = vunpack.c.l.b16 %v188
    %v462 = vunpack.c.l.b16 %v189
    %v463 = vunpack.c.l.b16 %v190
    %v464 = vunpack.c.l.b16 %v191
    %v465 = vunpack.c.l.b16 %v192
    %v466 = vpack.c.b16 %v339, %v338
    %v467 = vpack.c.b16 %v341, %v340
    %v468 = vpack.c.b16 %v343, %v342
    %v469 = vpack.c.b16 %v345, %v344
    %v470 = vpack.c.b16 %v347, %v346
    %v471 = vpack.c.b16 %v349, %v348
    %v472 = vpack.c.b16 %v351, %v350
    %v473 = vpack.c.b16 %v353, %v352
    %v474 = vpack.c.b16 %v355, %v354
    %v475 = vpack.c.b16 %v357, %v356
    %v476 = vpack.c.b16 %v359, %v358
    %v477 = vpack.c.b16 %v361, %v360
    %v478 = vpack.c.b16 %v363, %v362
    %v479 = vpack.c.b16 %v365, %v364
    %v480 = vpack.c.b16 %v367, %v366
    %v481 = vpack.c.b16 %v369, %v368
    %v482 = vpack.c.b16 %v371, %v370
    %v483 = vpack.c.b16 %v373, %v372
    %v484 = vpack.c.b16 %v375, %v374
    %v485 = vpack.c.b16 %v377, %v376
    %v486 = vpack.c.b16 %v379, %v378
    %v487 = vpack.c.b16 %v381, %v380
    %v488 = vpack.c.b16 %v383, %v382
    %v489 = vpack.c.b16 %v385, %v384
    %v490 = vpack.c.b16 %v387, %v386
    %v491 = vpack.c.b16 %v389, %v388
    %v492 = vpack.c.b16 %v391, %v390
    %v493 = vpack.c.b16 %v393, %v392
    %v494 = vpack.c.b16 %v395, %v394
    %v495 = vpack.c.b16 %v397, %v396
    %v496 = vpack.c.b16 %v399, %v398
    %v497 = vpack.c.b16 %v401, %v400
    %v498 = vpack.c.b16 %v403, %v402
    %v499 = vpack.c.b16 %v405, %v404
    %v500 = vpack.c.b16 %v407, %v406
    %v501 = vpack.c.b16 %v409, %v408
    %v502 = vpack.c.b16 %v411, %v410
    %v503 = vpack.c.b16 %v413, %v412
    %v504 = vpack.c.b16 %v415, %v414
    %v505 = vpack.c.b16 %v417, %v416
    %v506 = vpack.c.b16 %v419, %v418
    %v507 = vpack.c.b16 %v421, %v420
    %v508 = vpack.c.b16 %v423, %v422
    %v509 = vpack.c.b16 %v425, %v424
    %v510 = vpack.c.b16 %v427, %v426
    %v511 = vpack.c.b16 %v429, %v428
    %v512 = vpack.c.b16 %v431, %v430
    %v513 = vpack.c.b16 %v433, %v432
    %v514 = vpack.c.b16 %v435, %v434
    %v515 = vpack.c.b16 %v437, %v436
    %v516 = vpack.c.b16 %v439, %v438
    %v517 = vpack.c.b16 %v441, %v440
    %v518 = vpack.c.b16 %v443, %v442
    %v519 = vpack.c.b16 %v445, %v444
    %v520 = vpack.c.b16 %v447, %v446
    %v521 = vpack.c.b16 %v449, %v448
    %v522 = vpack.c.b16 %v451, %v450
    %v523 = vpack.c.b16 %v453, %v452
    %v524 = vpack.c.b16 %v455, %v454
    %v525 = vpack.c.b16 %v457, %v456
    %v526 = vpack.c.b16 %v459, %v458
    %v527 = vpack.c.b16 %v461, %v460
    %v528 = vpack.c.b16 %v463, %v462
    %v529 = vpack.c.b16 %v465, %v464
    %594 = vmatprep.subr.bf16.mxu0 0
    %595 = vmatpush1.bf16.msra.mxu0 %v466
    %596 = vmatprep.subr.bf16.mxu0 0
    %597 = vmatpush1.bf16.msra.mxu0 %v467
    %598 = vmatprep.subr.bf16.mxu0 0
    %599 = vmatpush1.bf16.msra.mxu0 %v468
    %600 = vmatprep.subr.bf16.mxu0 0
    %601 = vmatpush1.bf16.msra.mxu0 %v469
    %602 = vmatprep.subr.bf16.mxu0 0
    %603 = vmatpush1.bf16.msra.mxu0 %v470
    %604 = vmatprep.subr.bf16.mxu0 0
    %605 = vmatpush1.bf16.msra.mxu0 %v471
    %606 = vmatprep.subr.bf16.mxu0 0
    %607 = vmatpush1.bf16.msra.mxu0 %v472
    %608 = vmatprep.subr.bf16.mxu0 0
    %609 = vmatpush1.bf16.msra.mxu0 %v473
    %610 = vmatprep.subr.bf16.mxu0 0
    %611 = vmatpush1.bf16.msra.mxu0 %v474
    %612 = vmatprep.subr.bf16.mxu0 0
    %613 = vmatpush1.bf16.msra.mxu0 %v475
    %614 = vmatprep.subr.bf16.mxu0 0
    %615 = vmatpush1.bf16.msra.mxu0 %v476
    %616 = vmatprep.subr.bf16.mxu0 0
    %617 = vmatpush1.bf16.msra.mxu0 %v477
    %618 = vmatprep.subr.bf16.mxu0 0
    %619 = vmatpush1.bf16.msra.mxu0 %v478
    %620 = vmatprep.subr.bf16.mxu0 0
    %621 = vmatpush1.bf16.msra.mxu0 %v479
    %622 = vmatprep.subr.bf16.mxu0 0
    %623 = vmatpush1.bf16.msra.mxu0 %v480
    %624 = vmatprep.subr.bf16.mxu0 0
    %625 = vmatpush1.bf16.msra.mxu0 %v481
    %626 = vmatprep.mubr.bf16.mxu0 %v203
    %627 = vmatmul.mubr.bf16.gmra.mrb[0].mxu0 %v202
    %v628 = vpop.f32.mrb[0].mxu0
    %v629 = vadd.f32 0.0, %v628
    %v630 = vpop.f32.mrb[0].mxu0
    %v631 = vpop.f32.mrb[0].mxu0
    %v632 = vpop.f32.mrb[0].mxu0
    %633 = vdwg.mxu0
    %634 = vmatprep.subr.bf16.mxu0 0
    %635 = vmatpush1.bf16.msra.mxu0 %v482
    %636 = vmatprep.subr.bf16.mxu0 0
    %637 = vmatpush1.bf16.msra.mxu0 %v483
    %638 = vmatprep.subr.bf16.mxu0 0
    %639 = vmatpush1.bf16.msra.mxu0 %v484
    %640 = vmatprep.subr.bf16.mxu0 0
    %641 = vmatpush1.bf16.msra.mxu0 %v485
    %642 = vmatprep.subr.bf16.mxu0 0
    %643 = vmatpush1.bf16.msra.mxu0 %v486
    %644 = vmatprep.subr.bf16.mxu0 0
    %645 = vmatpush1.bf16.msra.mxu0 %v487
    %646 = vmatprep.subr.bf16.mxu0 0
    %647 = vmatpush1.bf16.msra.mxu0 %v488
    %648 = vmatprep.subr.bf16.mxu0 0
    %649 = vmatpush1.bf16.msra.mxu0 %v489
    %650 = vmatprep.subr.bf16.mxu0 0
    %651 = vmatpush1.bf16.msra.mxu0 %v490
    %652 = vmatprep.subr.bf16.mxu0 0
    %653 = vmatpush1.bf16.msra.mxu0 %v491
    %654 = vmatprep.subr.bf16.mxu0 0
    %655 = vmatpush1.bf16.msra.mxu0 %v492
    %656 = vmatprep.subr.bf16.mxu0 0
    %657 = vmatpush1.bf16.msra.mxu0 %v493
    %658 = vmatprep.subr.bf16.mxu0 0
    %659 = vmatpush1.bf16.msra.mxu0 %v494
    %660 = vmatprep.subr.bf16.mxu0 0
    %661 = vmatpush1.bf16.msra.mxu0 %v495
    %662 = vmatprep.subr.bf16.mxu0 0
    %663 = vmatpush1.bf16.msra.mxu0 %v496
    %664 = vmatprep.subr.bf16.mxu0 0
    %665 = vmatpush1.bf16.msra.mxu0 %v497
    %666 = vmatprep.mubr.bf16.mxu0 %v205
    %667 = vmatmul.mubr.bf16.gmra.mrb[0].mxu0 %v204
    %v668 = vpop.f32.mrb[0].mxu0
    %v669 = vadd.f32 %v629, %v668
    %v670 = vpop.f32.mrb[0].mxu0
    %v671 = vpop.f32.mrb[0].mxu0
    %v672 = vpop.f32.mrb[0].mxu0
    %673 = vdwg.mxu0
    %674 = vmatprep.subr.bf16.mxu0 0
    %675 = vmatpush1.bf16.msra.mxu0 %v498
    %676 = vmatprep.subr.bf16.mxu0 0
    %677 = vmatpush1.bf16.msra.mxu0 %v499
    %678 = vmatprep.subr.bf16.mxu0 0
    %679 = vmatpush1.bf16.msra.mxu0 %v500
    %680 = vmatprep.subr.bf16.mxu0 0
    %681 = vmatpush1.bf16.msra.mxu0 %v501
    %682 = vmatprep.subr.bf16.mxu0 0
    %683 = vmatpush1.bf16.msra.mxu0 %v502
    %684 = vmatprep.subr.bf16.mxu0 0
    %685 = vmatpush1.bf16.msra.mxu0 %v503
    %686 = vmatprep.subr.bf16.mxu0 0
    %687 = vmatpush1.bf16.msra.mxu0 %v504
    %688 = vmatprep.subr.bf16.mxu0 0
    %689 = vmatpush1.bf16.msra.mxu0 %v505
    %690 = vmatprep.subr.bf16.mxu0 0
    %691 = vmatpush1.bf16.msra.mxu0 %v506
    %692 = vmatprep.subr.bf16.mxu0 0
    %693 = vmatpush1.bf16.msra.mxu0 %v507
    %694 = vmatprep.subr.bf16.mxu0 0
    %695 = vmatpush1.bf16.msra.mxu0 %v508
    %696 = vmatprep.subr.bf16.mxu0 0
    %697 = vmatpush1.bf16.msra.mxu0 %v509
    %698 = vmatprep.subr.bf16.mxu0 0
    %699 = vmatpush1.bf16.msra.mxu0 %v510
    %700 = vmatprep.subr.bf16.mxu0 0
    %701 = vmatpush1.bf16.msra.mxu0 %v511
    %702 = vmatprep.subr.bf16.mxu0 0
    %703 = vmatpush1.bf16.msra.mxu0 %v512
    %704 = vmatprep.subr.bf16.mxu0 0
    %705 = vmatpush1.bf16.msra.mxu0 %v513
    %706 = vmatprep.mubr.bf16.mxu0 %v207
    %707 = vmatmul.mubr.bf16.gmra.mrb[0].mxu0 %v206
    %v708 = vpop.f32.mrb[0].mxu0
    %v709 = vadd.f32 %v669, %v708
    %v710 = vpop.f32.mrb[0].mxu0
    %v711 = vpop.f32.mrb[0].mxu0
    %v712 = vpop.f32.mrb[0].mxu0
    %713 = vdwg.mxu0
    %714 = vmatprep.subr.bf16.mxu0 0
    %715 = vmatpush1.bf16.msra.mxu0 %v514
    %716 = vmatprep.subr.bf16.mxu0 0
    %717 = vmatpush1.bf16.msra.mxu0 %v515
    %718 = vmatprep.subr.bf16.mxu0 0
    %719 = vmatpush1.bf16.msra.mxu0 %v516
    %720 = vmatprep.subr.bf16.mxu0 0
    %721 = vmatpush1.bf16.msra.mxu0 %v517
    %722 = vmatprep.subr.bf16.mxu0 0
    %723 = vmatpush1.bf16.msra.mxu0 %v518
    %724 = vmatprep.subr.bf16.mxu0 0
    %725 = vmatpush1.bf16.msra.mxu0 %v519
    %726 = vmatprep.subr.bf16.mxu0 0
    %727 = vmatpush1.bf16.msra.mxu0 %v520
    %728 = vmatprep.subr.bf16.mxu0 0
    %729 = vmatpush1.bf16.msra.mxu0 %v521
    %730 = vmatprep.subr.bf16.mxu0 0
    %731 = vmatpush1.bf16.msra.mxu0 %v522
    %732 = vmatprep.subr.bf16.mxu0 0
    %733 = vmatpush1.bf16.msra.mxu0 %v523
    %734 = vmatprep.subr.bf16.mxu0 0
    %735 = vmatpush1.bf16.msra.mxu0 %v524
    %736 = vmatprep.subr.bf16.mxu0 0
    %737 = vmatpush1.bf16.msra.mxu0 %v525
    %738 = vmatprep.subr.bf16.mxu0 0
    %739 = vmatpush1.bf16.msra.mxu0 %v526
    %740 = vmatprep.subr.bf16.mxu0 0
    %741 = vmatpush1.bf16.msra.mxu0 %v527
    %742 = vmatprep.subr.bf16.mxu0 0
    %743 = vmatpush1.bf16.msra.mxu0 %v528
    %744 = vmatprep.subr.bf16.mxu0 0
    %745 = vmatpush1.bf16.msra.mxu0 %v529
    %746 = vmatprep.mubr.bf16.mxu0 %v209
    %747 = vmatmul.mubr.bf16.gmra.mrb[0].mxu0 %v208
    %v748 = vpop.f32.mrb[0].mxu0
    %v749 = vadd.f32 %v709, %v748
    %v750 = vpop.f32.mrb[0].mxu0
    %v751 = vpop.f32.mrb[0].mxu0
    %v752 = vpop.f32.mrb[0].mxu0
    %753 = vdwg.mxu0
    %v754 = vadd.f32 %v193, %v749
    %755 = vst [vmem:[#allocation2] sm:$0xff] %v754
    %v756 = vld [vmem:[#allocation3] sm:$0xff]
    %v757 = vld [vmem:[#allocation7] sm:$0xff]
    %v758 = vld [vmem:[#allocation7 + $0x8] sm:$0xff]
    %v759 = vld [vmem:[#allocation7 + $0x10] sm:$0xff]
    %v760 = vld [vmem:[#allocation7 + $0x18] sm:$0xff]
    %v761 = vld [vmem:[#allocation7 + $0x20] sm:$0xff]
    %v762 = vld [vmem:[#allocation7 + $0x28] sm:$0xff]
    %v763 = vld [vmem:[#allocation7 + $0x30] sm:$0xff]
    %v764 = vld [vmem:[#allocation7 + $0x38] sm:$0xff]
    %v765 = vpack.c.bf16 %v757, %v757
    %v766 = vpack.c.bf16 %v758, %v758
    %v767 = vpack.c.bf16 %v759, %v759
    %v768 = vpack.c.bf16 %v760, %v760
    %v769 = vpack.c.bf16 %v761, %v761
    %v770 = vpack.c.bf16 %v762, %v762
    %v771 = vpack.c.bf16 %v763, %v763
    %v772 = vpack.c.bf16 %v764, %v764
    %773 = vmatprep.subr.bf16.mxu0 0
    %774 = vmatpush1.bf16.msra.mxu0 %v466
    %775 = vmatprep.subr.bf16.mxu0 0
    %776 = vmatpush1.bf16.msra.mxu0 %v467
    %777 = vmatprep.subr.bf16.mxu0 0
    %778 = vmatpush1.bf16.msra.mxu0 %v468
    %779 = vmatprep.subr.bf16.mxu0 0
    %780 = vmatpush1.bf16.msra.mxu0 %v469
    %781 = vmatprep.subr.bf16.mxu0 0
    %782 = vmatpush1.bf16.msra.mxu0 %v470
    %783 = vmatprep.subr.bf16.mxu0 0
    %784 = vmatpush1.bf16.msra.mxu0 %v471
    %785 = vmatprep.subr.bf16.mxu0 0
    %786 = vmatpush1.bf16.msra.mxu0 %v472
    %787 = vmatprep.subr.bf16.mxu0 0
    %788 = vmatpush1.bf16.msra.mxu0 %v473
    %789 = vmatprep.subr.bf16.mxu0 0
    %790 = vmatpush1.bf16.msra.mxu0 %v474
    %791 = vmatprep.subr.bf16.mxu0 0
    %792 = vmatpush1.bf16.msra.mxu0 %v475
    %793 = vmatprep.subr.bf16.mxu0 0
    %794 = vmatpush1.bf16.msra.mxu0 %v476
    %795 = vmatprep.subr.bf16.mxu0 0
    %796 = vmatpush1.bf16.msra.mxu0 %v477
    %797 = vmatprep.subr.bf16.mxu0 0
    %798 = vmatpush1.bf16.msra.mxu0 %v478
    %799 = vmatprep.subr.bf16.mxu0 0
    %800 = vmatpush1.bf16.msra.mxu0 %v479
    %801 = vmatprep.subr.bf16.mxu0 0
    %802 = vmatpush1.bf16.msra.mxu0 %v480
    %803 = vmatprep.subr.bf16.mxu0 0
    %804 = vmatpush1.bf16.msra.mxu0 %v481
    %805 = vmatprep.mubr.bf16.mxu0 %v766
    %806 = vmatmul.mubr.bf16.gmra.mrb[0].mxu0 %v765
    %v807 = vpop.f32.mrb[0].mxu0
    %v808 = vadd.f32 0.0, %v807
    %v809 = vpop.f32.mrb[0].mxu0
    %v810 = vpop.f32.mrb[0].mxu0
    %v811 = vpop.f32.mrb[0].mxu0
    %812 = vdwg.mxu0
    %813 = vmatprep.subr.bf16.mxu0 0
    %814 = vmatpush1.bf16.msra.mxu0 %v482
    %815 = vmatprep.subr.bf16.mxu0 0
    %816 = vmatpush1.bf16.msra.mxu0 %v483
    %817 = vmatprep.subr.bf16.mxu0 0
    %818 = vmatpush1.bf16.msra.mxu0 %v484
    %819 = vmatprep.subr.bf16.mxu0 0
    %820 = vmatpush1.bf16.msra.mxu0 %v485
    %821 = vmatprep.subr.bf16.mxu0 0
    %822 = vmatpush1.bf16.msra.mxu0 %v486
    %823 = vmatprep.subr.bf16.mxu0 0
    %824 = vmatpush1.bf16.msra.mxu0 %v487
    %825 = vmatprep.subr.bf16.mxu0 0
    %826 = vmatpush1.bf16.msra.mxu0 %v488
    %827 = vmatprep.subr.bf16.mxu0 0
    %828 = vmatpush1.bf16.msra.mxu0 %v489
    %829 = vmatprep.subr.bf16.mxu0 0
    %830 = vmatpush1.bf16.msra.mxu0 %v490
    %831 = vmatprep.subr.bf16.mxu0 0
    %832 = vmatpush1.bf16.msra.mxu0 %v491
    %833 = vmatprep.subr.bf16.mxu0 0
    %834 = vmatpush1.bf16.msra.mxu0 %v492
    %835 = vmatprep.subr.bf16.mxu0 0
    %836 = vmatpush1.bf16.msra.mxu0 %v493
    %837 = vmatprep.subr.bf16.mxu0 0
    %838 = vmatpush1.bf16.msra.mxu0 %v494
    %839 = vmatprep.subr.bf16.mxu0 0
    %840 = vmatpush1.bf16.msra.mxu0 %v495
    %841 = vmatprep.subr.bf16.mxu0 0
    %842 = vmatpush1.bf16.msra.mxu0 %v496
    %843 = vmatprep.subr.bf16.mxu0 0
    %844 = vmatpush1.bf16.msra.mxu0 %v497
    %845 = vmatprep.mubr.bf16.mxu0 %v768
    %846 = vmatmul.mubr.bf16.gmra.mrb[0].mxu0 %v767
    %v847 = vpop.f32.mrb[0].mxu0
    %v848 = vadd.f32 %v808, %v847
    %v849 = vpop.f32.mrb[0].mxu0
    %v850 = vpop.f32.mrb[0].mxu0
    %v851 = vpop.f32.mrb[0].mxu0
    %852 = vdwg.mxu0
    %853 = vmatprep.subr.bf16.mxu0 0
    %854 = vmatpush1.bf16.msra.mxu0 %v498
    %855 = vmatprep.subr.bf16.mxu0 0
    %856 = vmatpush1.bf16.msra.mxu0 %v499
    %857 = vmatprep.subr.bf16.mxu0 0
    %858 = vmatpush1.bf16.msra.mxu0 %v500
    %859 = vmatprep.subr.bf16.mxu0 0
    %860 = vmatpush1.bf16.msra.mxu0 %v501
    %861 = vmatprep.subr.bf16.mxu0 0
    %862 = vmatpush1.bf16.msra.mxu0 %v502
    %863 = vmatprep.subr.bf16.mxu0 0
    %864 = vmatpush1.bf16.msra.mxu0 %v503
    %865 = vmatprep.subr.bf16.mxu0 0
    %866 = vmatpush1.bf16.msra.mxu0 %v504
    %867 = vmatprep.subr.bf16.mxu0 0
    %868 = vmatpush1.bf16.msra.mxu0 %v505
    %869 = vmatprep.subr.bf16.mxu0 0
    %870 = vmatpush1.bf16.msra.mxu0 %v506
    %871 = vmatprep.subr.bf16.mxu0 0
    %872 = vmatpush1.bf16.msra.mxu0 %v507
    %873 = vmatprep.subr.bf16.mxu0 0
    %874 = vmatpush1.bf16.msra.mxu0 %v508
    %875 = vmatprep.subr.bf16.mxu0 0
    %876 = vmatpush1.bf16.msra.mxu0 %v509
    %877 = vmatprep.subr.bf16.mxu0 0
    %878 = vmatpush1.bf16.msra.mxu0 %v510
    %879 = vmatprep.subr.bf16.mxu0 0
    %880 = vmatpush1.bf16.msra.mxu0 %v511
    %881 = vmatprep.subr.bf16.mxu0 0
    %882 = vmatpush1.bf16.msra.mxu0 %v512
    %883 = vmatprep.subr.bf16.mxu0 0
    %884 = vmatpush1.bf16.msra.mxu0 %v513
    %885 = vmatprep.mubr.bf16.mxu0 %v770
    %886 = vmatmul.mubr.bf16.gmra.mrb[0].mxu0 %v769
    %v887 = vpop.f32.mrb[0].mxu0
    %v888 = vadd.f32 %v848, %v887
    %v889 = vpop.f32.mrb[0].mxu0
    %v890 = vpop.f32.mrb[0].mxu0
    %v891 = vpop.f32.mrb[0].mxu0
    %892 = vdwg.mxu0
    %893 = vmatprep.subr.bf16.mxu0 0
    %894 = vmatpush1.bf16.msra.mxu0 %v514
    %895 = vmatprep.subr.bf16.mxu0 0
    %896 = vmatpush1.bf16.msra.mxu0 %v515
    %897 = vmatprep.subr.bf16.mxu0 0
    %898 = vmatpush1.bf16.msra.mxu0 %v516
    %899 = vmatprep.subr.bf16.mxu0 0
    %900 = vmatpush1.bf16.msra.mxu0 %v517
    %901 = vmatprep.subr.bf16.mxu0 0
    %902 = vmatpush1.bf16.msra.mxu0 %v518
    %903 = vmatprep.subr.bf16.mxu0 0
    %904 = vmatpush1.bf16.msra.mxu0 %v519
    %905 = vmatprep.subr.bf16.mxu0 0
    %906 = vmatpush1.bf16.msra.mxu0 %v520
    %907 = vmatprep.subr.bf16.mxu0 0
    %908 = vmatpush1.bf16.msra.mxu0 %v521
    %909 = vmatprep.subr.bf16.mxu0 0
    %910 = vmatpush1.bf16.msra.mxu0 %v522
    %911 = vmatprep.subr.bf16.mxu0 0
    %912 = vmatpush1.bf16.msra.mxu0 %v523
    %913 = vmatprep.subr.bf16.mxu0 0
    %914 = vmatpush1.bf16.msra.mxu0 %v524
    %915 = vmatprep.subr.bf16.mxu0 0
    %916 = vmatpush1.bf16.msra.mxu0 %v525
    %917 = vmatprep.subr.bf16.mxu0 0
    %918 = vmatpush1.bf16.msra.mxu0 %v526
    %919 = vmatprep.subr.bf16.mxu0 0
    %920 = vmatpush1.bf16.msra.mxu0 %v527
    %921 = vmatprep.subr.bf16.mxu0 0
    %922 = vmatpush1.bf16.msra.mxu0 %v528
    %923 = vmatprep.subr.bf16.mxu0 0
    %924 = vmatpush1.bf16.msra.mxu0 %v529
    %925 = vmatprep.mubr.bf16.mxu0 %v772
    %926 = vmatmul.mubr.bf16.gmra.mrb[0].mxu0 %v771
    %v927 = vpop.f32.mrb[0].mxu0
    %v928 = vadd.f32 %v888, %v927
    %v929 = vpop.f32.mrb[0].mxu0
    %v930 = vpop.f32.mrb[0].mxu0
    %v931 = vpop.f32.mrb[0].mxu0
    %932 = vdwg.mxu0
    %v933 = vadd.f32 %v756, %v928
    %934 = vst [vmem:[#allocation3] sm:$0xff] %v933
    // Predicated region
    $region34: #{tpu_custom_call.1} parent=1 // pred_check
      %p935 = pneg %p59
    $region35: #{tpu_custom_call.1} parent=1 // pred_check_branch
      %937 = sbr.rel (%p935) target = $region37
    $region36: #{tpu_custom_call.1} parent=1 // pred_region
      %v938 = vld [vmem:[%s3] sm:$0x1]
      %v939 = vld [vmem:[#allocation2] sm:$0xff]
      %v941 = vlaneseq
      %v942 = vshrl.u32 %v941, 7
      %v943 = vsub.s32 0, %v942
      %v944 = vrot.slane %v938, %v943
      %v946 = vadd.f32 %v939, %v944
      %v947 = vpack.c.bf16 %v946, %v946
      %948 = vst [vmem:[#allocation10] sm:$0xf] %v947
      %v949 = vld [vmem:[#allocation3] sm:$0xff]
      %v950 = vadd.f32 %v949, %v944
      %v951 = vpack.c.bf16 %v950, %v950
      %952 = vst [vmem:[#allocation11] sm:$0xf] %v951
    $region37: #{tpu_custom_call.1} parent=1 // pred_fallthru
      _
    // Predicated region
    $region38: #{tpu_custom_call.1} parent=1 // pred_check
      _
    $region39: #{tpu_custom_call.1} parent=1 // pred_check_branch
      %954 = sbr.rel (0) target = $region41
    $region40: #{tpu_custom_call.1} parent=1 // pred_region
      %s956 = ssub.s32 64, 64
      %957 = vsyncadd [#allocation6], %s956
      %s959 = sshll.u32 [#allocation10], 4
      %s960 = int_to_ptr.vmem [resolvable:$true] %s959
      %962 = dma.vmem_to_hbm [thread:$0]  %s960, 64, %s4, [#allocation6]
    $region41: #{tpu_custom_call.1} parent=1 // pred_fallthru
      _
    // Predicated region
    $region42: #{tpu_custom_call.1} parent=1 // pred_check
      _
    $region43: #{tpu_custom_call.1} parent=1 // pred_check_branch
      %964 = sbr.rel (0) target = $region45
    $region44: #{tpu_custom_call.1} parent=1 // pred_region
      %s966 = ssub.s32 64, 64
      %967 = vsyncadd [#allocation12], %s966
      %s969 = sshll.u32 [#allocation11], 4
      %s970 = int_to_ptr.vmem [resolvable:$true] %s969
      %972 = dma.vmem_to_hbm [thread:$0]  %s970, 64, %s5, [#allocation12]
    $region45: #{tpu_custom_call.1} parent=1 // pred_fallthru
      _
    // Predicated region
    $region46: #{tpu_custom_call.1} parent=1 // pred_check
      _
    $region47: #{tpu_custom_call.1} parent=1 // pred_check_branch
      %974 = sbr.rel (0) target = $region49
    $region48: #{tpu_custom_call.1} parent=1 // pred_region
      %975 = dma.done [#allocation6], 64
    $region49: #{tpu_custom_call.1} parent=1 // pred_fallthru
      _
    // Predicated region
    $region50: #{tpu_custom_call.1} parent=1 // pred_check
      _
    $region51: #{tpu_custom_call.1} parent=1 // pred_check_branch
      %977 = sbr.rel (0) target = $region53
    $region52: #{tpu_custom_call.1} parent=1 // pred_region
      %978 = dma.done [#allocation12], 64
    $region53: #{tpu_custom_call.1} parent=1 // pred_fallthru
      _
    %979 = vsyncpa [#allocation5], 1
    %980 = vsyncpa [#allocation8], 1
    %981 = vsyncpa [#allocation6], 1
    %982 = vsyncpa [#allocation12], 1

</llo_original>
